<compile_context>
chip_gen: v7x
topology: tpu7x:2x2x1
jax: 0.10.0
libtpu: 0.0.40
codegen_flags: <defaults>
</compile_context>

<pallas_src>
import functools
import math

import jax
import jax.numpy as jnp
from jax.experimental import pallas as pl
from jax.experimental.pallas import tpu as pltpu

F32 = jnp.float32


# ------------------------- fully fused forward kernel -------------------------
def joint_kernel(slab_ref, out_ref, *, offs, n_head, lt, n_nodes, f_in, hid,
                 e, v, use_skip):
    hd = e // n_head

    def get(name, rows, cols):
        r = offs[name]
        return slab_ref[r:r + rows, 0:cols]          # static slice -> plain load

    # ----------------- GraphEncoder: 3 fused GCN layers -----------------
    # GraphConv (DGL, norm='both'): h' = A_hat @ (h @ W) + b, W is (in, out).
    a = get('a', n_nodes, n_nodes)
    h = get('x', n_nodes, f_in)
    h = jnp.maximum(
        jnp.dot(a, jnp.dot(h, get('w0', f_in, hid), preferred_element_type=F32),
                preferred_element_type=F32) + get('b0', 1, hid), 0.0)
    g = jnp.dot(a, jnp.dot(h, get('w1', hid, hid), preferred_element_type=F32),
                preferred_element_type=F32) + get('b1', 1, hid)
    h = jnp.maximum(0.6 * h + 0.4 * g, 0.0)
    g = jnp.dot(a, jnp.dot(h, get('w2', hid, e), preferred_element_type=F32),
                preferred_element_type=F32) + get('b2', 1, e)
    if use_skip:   # hidden != out -> 0.6*skip_proj(h) + 0.4*gcn(h)
        skip = (jnp.dot(h, get('ws', hid, e), preferred_element_type=F32)
                + get('bs', 1, e))
        nodes = 0.6 * skip + 0.4 * g
    else:
        nodes = 0.6 * h + 0.4 * g                    # (N, E), no final activation

    # --------------- MultiheadAttention: merged full-E projections ---------------
    tok = get('tok', lt, e)
    # 1/sqrt(hd) scale is folded into wq / bq on the host.
    q = jnp.dot(tok, get('wq', e, e), preferred_element_type=F32) + get('bq', 1, e)
    k = jnp.dot(nodes, get('wk', e, e), preferred_element_type=F32) + get('bk', 1, e)
    val = jnp.dot(nodes, get('wv', e, e), preferred_element_type=F32) + get('bv', 1, e)

    # Per-head score / softmax / context (inherently per head); static lane slices.
    p_heads, ctx_heads = [], []
    mean_acc = None
    for hh in range(n_head):
        lo, hi = hh * hd, (hh + 1) * hd
        qh, kh, vh = q[:, lo:hi], k[:, lo:hi], val[:, lo:hi]
        s = jax.lax.dot_general(qh, kh, (((1,), (1,)), ((), ())),
                                preferred_element_type=F32)          # (Lt, N)
        s = s - jnp.max(s, axis=-1, keepdims=True)
        ex = jnp.exp(s)
        p = ex / jnp.sum(ex, axis=-1, keepdims=True)                 # exact softmax
        p_heads.append(p)
        ctx_heads.append(jnp.dot(p, vh, preferred_element_type=F32))  # (Lt, hd)
        col_sum = jnp.sum(p, axis=0, keepdims=True)                  # (1, N)
        mean_acc = col_sum if mean_acc is None else mean_acc + col_sum

    ctx = jnp.concatenate(ctx_heads, axis=-1)                        # (Lt, H*hd=E)
    att_out = (jnp.dot(ctx, get('wo', e, e), preferred_element_type=F32)
               + get('bo', 1, e))                                    # (Lt, E)
    p_all = jnp.concatenate(p_heads, axis=-1)                        # (Lt, H*N)

    # combined_embeddings = cat([att_embeddings, token_embeddings], dim=1)
    out_ref[0:lt, 0:e] = att_out
    out_ref[lt:2 * lt, 0:e] = tok
    # attention weights, lane-packed as (Lt, H*N), head-major columns
    out_ref[2 * lt:3 * lt, 0:n_head * n_nodes] = p_all

    # ----------------- get_risk_score + BCELoss (chain loss) -----------------
    mean_w = mean_acc * (1.0 / float(n_head * lt))                   # (1, N)
    score = jax.nn.sigmoid(mean_w)
    y = get('y', 1, n_nodes)
    logp = jnp.maximum(jnp.log(score), -100.0)                       # BCELoss clamp
    log1mp = jnp.maximum(jnp.log(1.0 - score), -100.0)
    bce = -(y * logp + (1.0 - y) * log1mp)
    chain_loss = jnp.mean(bce, axis=(0, 1), keepdims=True)           # (1, 1)

    # ----------------- lm_head + shifted cross entropy -----------------
    # TODO(synk): identity stand-in for the pretrained Gemma transformer body,
    # so hidden_states == combined_embeddings and hidden[Lt:-1] == tok[:Lt-1].
    shift_h = tok[0:lt - 1, :]                                       # (T, E)
    logits = jnp.dot(shift_h, get('wlm', e, v),
                     preferred_element_type=F32)                     # (T, V)
    m = jnp.max(logits, axis=-1, keepdims=True)
    lse = jnp.log(jnp.sum(jnp.exp(logits - m), axis=-1, keepdims=True)) + m
    tgt = get('tgt', lt - 1, 1).astype(jnp.int32)                    # (T, 1)
    col = jax.lax.broadcasted_iota(jnp.int32, logits.shape, 1)
    picked = jnp.sum(jnp.where(col == tgt, logits, 0.0), axis=-1, keepdims=True)
    tok_loss = jnp.mean(lse - picked, axis=(0, 1), keepdims=True)    # (1, 1)

    # scalar losses packed into the last row of the output slab (no extra
    # padded per-scalar output tiles / DMAs)
    lane = jax.lax.broadcasted_iota(jnp.int32, (1, out_ref.shape[1]), 1)
    loss_row = (jnp.where(lane == 0, tok_loss, 0.0)
                + jnp.where(lane == 1, chain_loss, 0.0))
    out_ref[3 * lt:3 * lt + 1, :] = loss_row


def joint_forward(slab, *, offs, n_head, lt, n_nodes, f_in, hid, e, v, use_skip):
    out_cols = max(e, n_head * n_nodes)
    kern = functools.partial(joint_kernel, offs=offs, n_head=n_head, lt=lt,
                             n_nodes=n_nodes, f_in=f_in, hid=hid, e=e, v=v,
                             use_skip=use_skip)
    return pl.pallas_call(
        kern,
        out_shape=jax.ShapeDtypeStruct((3 * lt + 1, out_cols), F32),
        in_specs=[pl.BlockSpec(memory_space=pltpu.MemorySpace.VMEM)],
        out_specs=pl.BlockSpec(memory_space=pltpu.MemorySpace.VMEM),
    )(slab)


# ------------------------- host-side slab packing helper -------------------------
def pack_rows(named_tensors, width):
    """Row-stack 2-D f32 tensors (zero-padded to `width` cols) into one slab."""
    offs, rows, r = {}, [], 0
    for name, t in named_tensors:
        t = jnp.asarray(t, F32)
        pad = width - t.shape[1]
        if pad:
            t = jnp.pad(t, ((0, 0), (0, pad)))
        offs[name] = r
        r += t.shape[0]
        rows.append(t)
    return jnp.concatenate(rows, axis=0), offs


# ------------------------------------ main ------------------------------------
if __name__ == "__main__":
    key = jax.random.PRNGKey(0)
    ks = jax.random.split(key, 16)

    # module hyper-parameters (small but consistent with the forward pass)
    g_in_feat, g_hidden, g_out, n_head = 16, 16, 32, 4
    N = 8            # graph nodes
    Lt = 8           # token sequence length (batch = 1, as in tokenizer.encode)
    V = 64           # synthetic vocabulary size
    E = g_out        # token / attention embedding dim (== g_out_size)
    hd = E // n_head
    scale = 1.0 / math.sqrt(hd)

    # ---- synthetic graph: ring + self-loops, symmetric GCN normalization ----
    idx = jnp.arange(N)
    A = jnp.zeros((N, N), F32)
    A = A.at[idx, (idx + 1) % N].set(1.0)
    A = A.at[(idx + 1) % N, idx].set(1.0)
    A = A + jnp.eye(N, dtype=F32)                 # self-loops (typical DGL usage)
    deg = A.sum(axis=1)
    dinv = 1.0 / jnp.sqrt(deg)
    a_hat = (dinv[:, None] * A * dinv[None, :]).astype(F32)

    node_feats = jax.random.normal(ks[0], (N, g_in_feat), F32)

    # ---- GraphEncoder params (GraphConv W:(in,out), b; skip Linear (out,in)) ----
    w0 = 0.2 * jax.random.normal(ks[1], (g_in_feat, g_hidden), F32)
    b0 = 0.05 * jax.random.normal(ks[2], (1, g_hidden), F32)
    w1 = 0.2 * jax.random.normal(ks[3], (g_hidden, g_hidden), F32)
    b1 = 0.05 * jax.random.normal(ks[4], (1, g_hidden), F32)
    w2 = 0.2 * jax.random.normal(ks[5], (g_hidden, g_out), F32)
    b2 = 0.05 * jax.random.normal(ks[6], (1, g_out), F32)
    ws = 0.2 * jax.random.normal(ks[7], (g_out, g_hidden), F32)   # nn.Linear weight
    bs = 0.05 * jax.random.normal(ks[8], (1, g_out), F32)

    # ---- MultiheadAttention params (torch: y = x @ W^T + b), pre-transposed ----
    wq = 0.2 * jax.random.normal(ks[9], (E, E), F32)
    wk = 0.2 * jax.random.normal(ks[10], (E, E), F32)
    wv = 0.2 * jax.random.normal(ks[11], (E, E), F32)
    wo = 0.2 * jax.random.normal(ks[12], (E, E), F32)
    bq = jnp.zeros((1, E), F32)        # torch default init: in_proj/out_proj bias = 0
    bk = jnp.zeros((1, E), F32)
    bv = jnp.zeros((1, E), F32)
    bo = jnp.zeros((1, E), F32)

    # ---- synthetic text-encoder params ----
    embed_table = 0.1 * jax.random.normal(ks[13], (V, E), F32)    # embed_tokens
    w_lm = 0.1 * jax.random.normal(ks[14], (V, E), F32)           # lm_head

    # ---- inputs of forward() ----
    token_ids = jax.random.randint(ks[15], (1, Lt), 0, V)                  # tokenizer stand-in
    chain_labels = (jax.random.uniform(ks[15], (N,)) > 0.5).astype(F32)    # (Lk,)
    answer_labels = 1
    align_labels = None                                                    # fuse() gets None

    # token embeddings (embedding gather = host glue)
    token_embeddings = jnp.take(embed_table, token_ids[0], axis=0)         # (Lt, E)
    targets = token_ids[0, 1:].astype(F32)[:, None]                        # (Lt-1, 1)

    # ---- pack all parameters / small activations into ONE input slab ----
    tensors = [
        ('a', a_hat), ('x', node_feats),
        ('w0', w0), ('b0', b0), ('w1', w1), ('b1', b1),
        ('w2', w2), ('b2', b2), ('ws', ws.T), ('bs', bs),
        ('tok', token_embeddings),
        ('wq', wq.T * scale), ('bq', bq * scale),        # softmax scale folded in
        ('wk', wk.T), ('bk', bk),
        ('wv', wv.T), ('bv', bv),
        ('wo', wo.T), ('bo', bo),
        ('wlm', w_lm.T),                                  # (E, V)
        ('y', chain_labels[None]),                        # (1, N)
        ('tgt', targets),                                 # (Lt-1, 1)
    ]
    slab, offs = pack_rows(tensors, width=max(V, E))      # (264, 64) f32, one DMA

    # ================= forward pass (single fused Pallas kernel) =================
    out = joint_forward(slab, offs=offs, n_head=n_head, lt=Lt, n_nodes=N,
                        f_in=g_in_feat, hid=g_hidden, e=E, v=V,
                        use_skip=(g_hidden != g_out))

    combined_embeddings = out[0:2 * Lt, 0:E][None]                         # (1, 2Lt, E)
    att_weights = out[2 * Lt:3 * Lt, 0:n_head * N].reshape(Lt, n_head, N)
    att_weights = jnp.transpose(att_weights, (1, 0, 2))[None]              # (1, H, Lt, N)
    token_loss = out[3 * Lt, 0]
    align_loss = jnp.float32(0.0)                      # fuse(..., align_labels=None)
    if answer_labels == 1:
        chain_loss = out[3 * Lt, 1]
    else:
        chain_loss = jnp.float32(0.0)
    ttl_loss = token_loss + chain_loss

    jax.block_until_ready((ttl_loss, token_loss, align_loss, chain_loss,
                           combined_embeddings, att_weights))
    print("KERNEL_OK")
</pallas_src>

<mosaic_0001>
module attributes {stable_mosaic.version = 11 : i64} {
  func.func @joint_kernel(%arg0: memref<264x64xf32, #tpu.memory_space<vmem>>, %arg1: memref<25x32xf32, #tpu.memory_space<vmem>>) attributes {dimension_semantics = [], scalar_prefetch = 0 : i64, scratch_operands = 0 : i64, tpu.core_type = #tpu.core_type<tc>} {
    %c0 = arith.constant 0 : index
    %c0_0 = arith.constant 0 : index
    %0 = vector.load %arg0[%c0, %c0_0] : memref<264x64xf32, #tpu.memory_space<vmem>>, vector<8x8xf32>
    %c8 = arith.constant 8 : index
    %c0_1 = arith.constant 0 : index
    %1 = vector.load %arg0[%c8, %c0_1] : memref<264x64xf32, #tpu.memory_space<vmem>>, vector<8x16xf32>
    %c16 = arith.constant 16 : index
    %c0_2 = arith.constant 0 : index
    %2 = vector.load %arg0[%c16, %c0_2] : memref<264x64xf32, #tpu.memory_space<vmem>>, vector<16x16xf32>
    %cst = arith.constant dense<0.000000e+00> : vector<8x16xf32>
    %3 = tpu.matmul %1, %2, %cst {dimension_numbers = #tpu.dot_dimension_numbers<[1], [0], [0], [1], [0, 0, 1, 1], [], []>} : vector<8x16xf32>, vector<16x16xf32>, vector<8x16xf32> -> vector<8x16xf32>
    %cst_3 = arith.constant dense<0.000000e+00> : vector<8x16xf32>
    %4 = tpu.matmul %0, %3, %cst_3 {dimension_numbers = #tpu.dot_dimension_numbers<[1], [0], [0], [1], [0, 0, 1, 1], [], []>} : vector<8x8xf32>, vector<8x16xf32>, vector<8x16xf32> -> vector<8x16xf32>
    %c32 = arith.constant 32 : index
    %c0_4 = arith.constant 0 : index
    %5 = vector.load %arg0[%c32, %c0_4] : memref<264x64xf32, #tpu.memory_space<vmem>>, vector<1x16xf32>
    %6 = vector.broadcast %5 : vector<1x16xf32> to vector<8x16xf32>
    %7 = arith.addf %4, %6 : vector<8x16xf32>
    %cst_5 = arith.constant 0.000000e+00 : f32
    %8 = vector.broadcast %cst_5 : f32 to vector<8x16xf32>
    %9 = arith.maximumf %7, %8 : vector<8x16xf32>
    %c33 = arith.constant 33 : index
    %c0_6 = arith.constant 0 : index
    %10 = vector.load %arg0[%c33, %c0_6] : memref<264x64xf32, #tpu.memory_space<vmem>>, vector<16x16xf32>
    %cst_7 = arith.constant dense<0.000000e+00> : vector<8x16xf32>
    %11 = tpu.matmul %9, %10, %cst_7 {dimension_numbers = #tpu.dot_dimension_numbers<[1], [0], [0], [1], [0, 0, 1, 1], [], []>} : vector<8x16xf32>, vector<16x16xf32>, vector<8x16xf32> -> vector<8x16xf32>
    %cst_8 = arith.constant dense<0.000000e+00> : vector<8x16xf32>
    %12 = tpu.matmul %0, %11, %cst_8 {dimension_numbers = #tpu.dot_dimension_numbers<[1], [0], [0], [1], [0, 0, 1, 1], [], []>} : vector<8x8xf32>, vector<8x16xf32>, vector<8x16xf32> -> vector<8x16xf32>
    %c49 = arith.constant 49 : index
    %c0_9 = arith.constant 0 : index
    %13 = vector.load %arg0[%c49, %c0_9] : memref<264x64xf32, #tpu.memory_space<vmem>>, vector<1x16xf32>
    %14 = vector.broadcast %13 : vector<1x16xf32> to vector<8x16xf32>
    %15 = arith.addf %12, %14 : vector<8x16xf32>
    %cst_10 = arith.constant 6.000000e-01 : f32
    %16 = vector.broadcast %cst_10 : f32 to vector<8x16xf32>
    %17 = arith.mulf %16, %9 : vector<8x16xf32>
    %cst_11 = arith.constant 4.000000e-01 : f32
    %18 = vector.broadcast %cst_11 : f32 to vector<8x16xf32>
    %19 = arith.mulf %18, %15 : vector<8x16xf32>
    %20 = arith.addf %17, %19 : vector<8x16xf32>
    %cst_12 = arith.constant 0.000000e+00 : f32
    %21 = vector.broadcast %cst_12 : f32 to vector<8x16xf32>
    %22 = arith.maximumf %20, %21 : vector<8x16xf32>
    %c50 = arith.constant 50 : index
    %c0_13 = arith.constant 0 : index
    %23 = vector.load %arg0[%c50, %c0_13] : memref<264x64xf32, #tpu.memory_space<vmem>>, vector<16x32xf32>
    %cst_14 = arith.constant dense<0.000000e+00> : vector<8x32xf32>
    %24 = tpu.matmul %22, %23, %cst_14 {dimension_numbers = #tpu.dot_dimension_numbers<[1], [0], [0], [1], [0, 0, 1, 1], [], []>} : vector<8x16xf32>, vector<16x32xf32>, vector<8x32xf32> -> vector<8x32xf32>
    %cst_15 = arith.constant dense<0.000000e+00> : vector<8x32xf32>
    %25 = tpu.matmul %0, %24, %cst_15 {dimension_numbers = #tpu.dot_dimension_numbers<[1], [0], [0], [1], [0, 0, 1, 1], [], []>} : vector<8x8xf32>, vector<8x32xf32>, vector<8x32xf32> -> vector<8x32xf32>
    %c66 = arith.constant 66 : index
    %c0_16 = arith.constant 0 : index
    %26 = vector.load %arg0[%c66, %c0_16] : memref<264x64xf32, #tpu.memory_space<vmem>>, vector<1x32xf32>
    %27 = vector.broadcast %26 : vector<1x32xf32> to vector<8x32xf32>
    %28 = arith.addf %25, %27 : vector<8x32xf32>
    %c67 = arith.constant 67 : index
    %c0_17 = arith.constant 0 : index
    %29 = vector.load %arg0[%c67, %c0_17] : memref<264x64xf32, #tpu.memory_space<vmem>>, vector<16x32xf32>
    %cst_18 = arith.constant dense<0.000000e+00> : vector<8x32xf32>
    %30 = tpu.matmul %22, %29, %cst_18 {dimension_numbers = #tpu.dot_dimension_numbers<[1], [0], [0], [1], [0, 0, 1, 1], [], []>} : vector<8x16xf32>, vector<16x32xf32>, vector<8x32xf32> -> vector<8x32xf32>
    %c83 = arith.constant 83 : index
    %c0_19 = arith.constant 0 : index
    %31 = vector.load %arg0[%c83, %c0_19] : memref<264x64xf32, #tpu.memory_space<vmem>>, vector<1x32xf32>
    %32 = vector.broadcast %31 : vector<1x32xf32> to vector<8x32xf32>
    %33 = arith.addf %30, %32 : vector<8x32xf32>
    %cst_20 = arith.constant 6.000000e-01 : f32
    %34 = vector.broadcast %cst_20 : f32 to vector<8x32xf32>
    %35 = arith.mulf %34, %33 : vector<8x32xf32>
    %cst_21 = arith.constant 4.000000e-01 : f32
    %36 = vector.broadcast %cst_21 : f32 to vector<8x32xf32>
    %37 = arith.mulf %36, %28 : vector<8x32xf32>
    %38 = arith.addf %35, %37 : vector<8x32xf32>
    %c84 = arith.constant 84 : index
    %c0_22 = arith.constant 0 : index
    %39 = vector.load %arg0[%c84, %c0_22] : memref<264x64xf32, #tpu.memory_space<vmem>>, vector<8x32xf32>
    %c92 = arith.constant 92 : index
    %c0_23 = arith.constant 0 : index
    %40 = vector.load %arg0[%c92, %c0_23] : memref<264x64xf32, #tpu.memory_space<vmem>>, vector<32x32xf32>
    %cst_24 = arith.constant dense<0.000000e+00> : vector<8x32xf32>
    %41 = tpu.matmul %39, %40, %cst_24 {dimension_numbers = #tpu.dot_dimension_numbers<[1], [0], [0], [1], [0, 0, 1, 1], [], []>} : vector<8x32xf32>, vector<32x32xf32>, vector<8x32xf32> -> vector<8x32xf32>
    %c124 = arith.constant 124 : index
    %c0_25 = arith.constant 0 : index
    %42 = vector.load %arg0[%c124, %c0_25] : memref<264x64xf32, #tpu.memory_space<vmem>>, vector<1x32xf32>
    %43 = vector.broadcast %42 : vector<1x32xf32> to vector<8x32xf32>
    %44 = arith.addf %41, %43 : vector<8x32xf32>
    %c125 = arith.constant 125 : index
    %c0_26 = arith.constant 0 : index
    %45 = vector.load %arg0[%c125, %c0_26] : memref<264x64xf32, #tpu.memory_space<vmem>>, vector<32x32xf32>
    %cst_27 = arith.constant dense<0.000000e+00> : vector<8x32xf32>
    %46 = tpu.matmul %38, %45, %cst_27 {dimension_numbers = #tpu.dot_dimension_numbers<[1], [0], [0], [1], [0, 0, 1, 1], [], []>} : vector<8x32xf32>, vector<32x32xf32>, vector<8x32xf32> -> vector<8x32xf32>
    %c157 = arith.constant 157 : index
    %c0_28 = arith.constant 0 : index
    %47 = vector.load %arg0[%c157, %c0_28] : memref<264x64xf32, #tpu.memory_space<vmem>>, vector<1x32xf32>
    %48 = vector.broadcast %47 : vector<1x32xf32> to vector<8x32xf32>
    %49 = arith.addf %46, %48 : vector<8x32xf32>
    %c158 = arith.constant 158 : index
    %c0_29 = arith.constant 0 : index
    %50 = vector.load %arg0[%c158, %c0_29] : memref<264x64xf32, #tpu.memory_space<vmem>>, vector<32x32xf32>
    %cst_30 = arith.constant dense<0.000000e+00> : vector<8x32xf32>
    %51 = tpu.matmul %38, %50, %cst_30 {dimension_numbers = #tpu.dot_dimension_numbers<[1], [0], [0], [1], [0, 0, 1, 1], [], []>} : vector<8x32xf32>, vector<32x32xf32>, vector<8x32xf32> -> vector<8x32xf32>
    %c190 = arith.constant 190 : index
    %c0_31 = arith.constant 0 : index
    %52 = vector.load %arg0[%c190, %c0_31] : memref<264x64xf32, #tpu.memory_space<vmem>>, vector<1x32xf32>
    %53 = vector.broadcast %52 : vector<1x32xf32> to vector<8x32xf32>
    %54 = arith.addf %51, %53 : vector<8x32xf32>
    %55 = vector.extract_strided_slice %44 {offsets = [0, 0], sizes = [8, 8], strides = [1, 1]} : vector<8x32xf32> to vector<8x8xf32>
    %56 = vector.extract_strided_slice %49 {offsets = [0, 0], sizes = [8, 8], strides = [1, 1]} : vector<8x32xf32> to vector<8x8xf32>
    %57 = vector.extract_strided_slice %54 {offsets = [0, 0], sizes = [8, 8], strides = [1, 1]} : vector<8x32xf32> to vector<8x8xf32>
    %cst_32 = arith.constant dense<0.000000e+00> : vector<8x8xf32>
    %58 = tpu.matmul %55, %56, %cst_32 {dimension_numbers = #tpu.dot_dimension_numbers<[1], [1], [0], [0], [0, 0, 1, 0], [], []>} : vector<8x8xf32>, vector<8x8xf32>, vector<8x8xf32> -> vector<8x8xf32>
    %cst_33 = arith.constant dense<0xFF800000> : vector<8xf32>
    %59 = vector.multi_reduction <maximumf>, %58, %cst_33 [1] : vector<8x8xf32> to vector<8xf32>
    %60 = vector.shape_cast %59 : vector<8xf32> to vector<8x1xf32>
    %61 = vector.broadcast %60 : vector<8x1xf32> to vector<8x8xf32>
    %62 = arith.subf %58, %61 : vector<8x8xf32>
    %63 = math.exp %62 : vector<8x8xf32>
    %cst_34 = arith.constant dense<0.000000e+00> : vector<8xf32>
    %64 = vector.multi_reduction <add>, %63, %cst_34 [1] : vector<8x8xf32> to vector<8xf32>
    %65 = vector.shape_cast %64 : vector<8xf32> to vector<8x1xf32>
    %66 = vector.broadcast %65 : vector<8x1xf32> to vector<8x8xf32>
    %67 = arith.divf %63, %66 : vector<8x8xf32>
    %cst_35 = arith.constant dense<0.000000e+00> : vector<8x8xf32>
    %68 = tpu.matmul %67, %57, %cst_35 {dimension_numbers = #tpu.dot_dimension_numbers<[1], [0], [0], [1], [0, 0, 1, 1], [], []>} : vector<8x8xf32>, vector<8x8xf32>, vector<8x8xf32> -> vector<8x8xf32>
    %cst_36 = arith.constant dense<0.000000e+00> : vector<8xf32>
    %69 = vector.multi_reduction <add>, %67, %cst_36 [0] : vector<8x8xf32> to vector<8xf32>
    %70 = vector.shape_cast %69 : vector<8xf32> to vector<1x8xf32>
    %71 = vector.extract_strided_slice %44 {offsets = [0, 8], sizes = [8, 8], strides = [1, 1]} : vector<8x32xf32> to vector<8x8xf32>
    %72 = vector.extract_strided_slice %49 {offsets = [0, 8], sizes = [8, 8], strides = [1, 1]} : vector<8x32xf32> to vector<8x8xf32>
    %73 = vector.extract_strided_slice %54 {offsets = [0, 8], sizes = [8, 8], strides = [1, 1]} : vector<8x32xf32> to vector<8x8xf32>
    %cst_37 = arith.constant dense<0.000000e+00> : vector<8x8xf32>
    %74 = tpu.matmul %71, %72, %cst_37 {dimension_numbers = #tpu.dot_dimension_numbers<[1], [1], [0], [0], [0, 0, 1, 0], [], []>} : vector<8x8xf32>, vector<8x8xf32>, vector<8x8xf32> -> vector<8x8xf32>
    %cst_38 = arith.constant dense<0xFF800000> : vector<8xf32>
    %75 = vector.multi_reduction <maximumf>, %74, %cst_38 [1] : vector<8x8xf32> to vector<8xf32>
    %76 = vector.shape_cast %75 : vector<8xf32> to vector<8x1xf32>
    %77 = vector.broadcast %76 : vector<8x1xf32> to vector<8x8xf32>
    %78 = arith.subf %74, %77 : vector<8x8xf32>
    %79 = math.exp %78 : vector<8x8xf32>
    %cst_39 = arith.constant dense<0.000000e+00> : vector<8xf32>
    %80 = vector.multi_reduction <add>, %79, %cst_39 [1] : vector<8x8xf32> to vector<8xf32>
    %81 = vector.shape_cast %80 : vector<8xf32> to vector<8x1xf32>
    %82 = vector.broadcast %81 : vector<8x1xf32> to vector<8x8xf32>
    %83 = arith.divf %79, %82 : vector<8x8xf32>
    %cst_40 = arith.constant dense<0.000000e+00> : vector<8x8xf32>
    %84 = tpu.matmul %83, %73, %cst_40 {dimension_numbers = #tpu.dot_dimension_numbers<[1], [0], [0], [1], [0, 0, 1, 1], [], []>} : vector<8x8xf32>, vector<8x8xf32>, vector<8x8xf32> -> vector<8x8xf32>
    %cst_41 = arith.constant dense<0.000000e+00> : vector<8xf32>
    %85 = vector.multi_reduction <add>, %83, %cst_41 [0] : vector<8x8xf32> to vector<8xf32>
    %86 = vector.shape_cast %85 : vector<8xf32> to vector<1x8xf32>
    %87 = arith.addf %70, %86 : vector<1x8xf32>
    %88 = vector.extract_strided_slice %44 {offsets = [0, 16], sizes = [8, 8], strides = [1, 1]} : vector<8x32xf32> to vector<8x8xf32>
    %89 = vector.extract_strided_slice %49 {offsets = [0, 16], sizes = [8, 8], strides = [1, 1]} : vector<8x32xf32> to vector<8x8xf32>
    %90 = vector.extract_strided_slice %54 {offsets = [0, 16], sizes = [8, 8], strides = [1, 1]} : vector<8x32xf32> to vector<8x8xf32>
    %cst_42 = arith.constant dense<0.000000e+00> : vector<8x8xf32>
    %91 = tpu.matmul %88, %89, %cst_42 {dimension_numbers = #tpu.dot_dimension_numbers<[1], [1], [0], [0], [0, 0, 1, 0], [], []>} : vector<8x8xf32>, vector<8x8xf32>, vector<8x8xf32> -> vector<8x8xf32>
    %cst_43 = arith.constant dense<0xFF800000> : vector<8xf32>
    %92 = vector.multi_reduction <maximumf>, %91, %cst_43 [1] : vector<8x8xf32> to vector<8xf32>
    %93 = vector.shape_cast %92 : vector<8xf32> to vector<8x1xf32>
    %94 = vector.broadcast %93 : vector<8x1xf32> to vector<8x8xf32>
    %95 = arith.subf %91, %94 : vector<8x8xf32>
    %96 = math.exp %95 : vector<8x8xf32>
    %cst_44 = arith.constant dense<0.000000e+00> : vector<8xf32>
    %97 = vector.multi_reduction <add>, %96, %cst_44 [1] : vector<8x8xf32> to vector<8xf32>
    %98 = vector.shape_cast %97 : vector<8xf32> to vector<8x1xf32>
    %99 = vector.broadcast %98 : vector<8x1xf32> to vector<8x8xf32>
    %100 = arith.divf %96, %99 : vector<8x8xf32>
    %cst_45 = arith.constant dense<0.000000e+00> : vector<8x8xf32>
    %101 = tpu.matmul %100, %90, %cst_45 {dimension_numbers = #tpu.dot_dimension_numbers<[1], [0], [0], [1], [0, 0, 1, 1], [], []>} : vector<8x8xf32>, vector<8x8xf32>, vector<8x8xf32> -> vector<8x8xf32>
    %cst_46 = arith.constant dense<0.000000e+00> : vector<8xf32>
    %102 = vector.multi_reduction <add>, %100, %cst_46 [0] : vector<8x8xf32> to vector<8xf32>
    %103 = vector.shape_cast %102 : vector<8xf32> to vector<1x8xf32>
    %104 = arith.addf %87, %103 : vector<1x8xf32>
    %105 = vector.extract_strided_slice %44 {offsets = [0, 24], sizes = [8, 8], strides = [1, 1]} : vector<8x32xf32> to vector<8x8xf32>
    %106 = vector.extract_strided_slice %49 {offsets = [0, 24], sizes = [8, 8], strides = [1, 1]} : vector<8x32xf32> to vector<8x8xf32>
    %107 = vector.extract_strided_slice %54 {offsets = [0, 24], sizes = [8, 8], strides = [1, 1]} : vector<8x32xf32> to vector<8x8xf32>
    %cst_47 = arith.constant dense<0.000000e+00> : vector<8x8xf32>
    %108 = tpu.matmul %105, %106, %cst_47 {dimension_numbers = #tpu.dot_dimension_numbers<[1], [1], [0], [0], [0, 0, 1, 0], [], []>} : vector<8x8xf32>, vector<8x8xf32>, vector<8x8xf32> -> vector<8x8xf32>
    %cst_48 = arith.constant dense<0xFF800000> : vector<8xf32>
    %109 = vector.multi_reduction <maximumf>, %108, %cst_48 [1] : vector<8x8xf32> to vector<8xf32>
    %110 = vector.shape_cast %109 : vector<8xf32> to vector<8x1xf32>
    %111 = vector.broadcast %110 : vector<8x1xf32> to vector<8x8xf32>
    %112 = arith.subf %108, %111 : vector<8x8xf32>
    %113 = math.exp %112 : vector<8x8xf32>
    %cst_49 = arith.constant dense<0.000000e+00> : vector<8xf32>
    %114 = vector.multi_reduction <add>, %113, %cst_49 [1] : vector<8x8xf32> to vector<8xf32>
    %115 = vector.shape_cast %114 : vector<8xf32> to vector<8x1xf32>
    %116 = vector.broadcast %115 : vector<8x1xf32> to vector<8x8xf32>
    %117 = arith.divf %113, %116 : vector<8x8xf32>
    %cst_50 = arith.constant dense<0.000000e+00> : vector<8x8xf32>
    %118 = tpu.matmul %117, %107, %cst_50 {dimension_numbers = #tpu.dot_dimension_numbers<[1], [0], [0], [1], [0, 0, 1, 1], [], []>} : vector<8x8xf32>, vector<8x8xf32>, vector<8x8xf32> -> vector<8x8xf32>
    %cst_51 = arith.constant dense<0.000000e+00> : vector<8xf32>
    %119 = vector.multi_reduction <add>, %117, %cst_51 [0] : vector<8x8xf32> to vector<8xf32>
    %120 = vector.shape_cast %119 : vector<8xf32> to vector<1x8xf32>
    %121 = arith.addf %104, %120 : vector<1x8xf32>
    %122 = tpu.concatenate %68, %84, %101, %118 in 1 : vector<8x8xf32>, vector<8x8xf32>, vector<8x8xf32>, vector<8x8xf32> -> vector<8x32xf32>
    %c191 = arith.constant 191 : index
    %c0_52 = arith.constant 0 : index
    %123 = vector.load %arg0[%c191, %c0_52] : memref<264x64xf32, #tpu.memory_space<vmem>>, vector<32x32xf32>
    %cst_53 = arith.constant dense<0.000000e+00> : vector<8x32xf32>
    %124 = tpu.matmul %122, %123, %cst_53 {dimension_numbers = #tpu.dot_dimension_numbers<[1], [0], [0], [1], [0, 0, 1, 1], [], []>} : vector<8x32xf32>, vector<32x32xf32>, vector<8x32xf32> -> vector<8x32xf32>
    %c223 = arith.constant 223 : index
    %c0_54 = arith.constant 0 : index
    %125 = vector.load %arg0[%c223, %c0_54] : memref<264x64xf32, #tpu.memory_space<vmem>>, vector<1x32xf32>
    %126 = vector.broadcast %125 : vector<1x32xf32> to vector<8x32xf32>
    %127 = arith.addf %124, %126 : vector<8x32xf32>
    %128 = tpu.concatenate %67, %83, %100, %117 in 1 : vector<8x8xf32>, vector<8x8xf32>, vector<8x8xf32>, vector<8x8xf32> -> vector<8x32xf32>
    %c0_55 = arith.constant 0 : index
    %c0_56 = arith.constant 0 : index
    %129 = vector.load %arg1[%c0_55, %c0_56] : memref<25x32xf32, #tpu.memory_space<vmem>>, vector<8x32xf32>
    tpu.vector_store %arg1[%c0_55, %c0_56], %127 {strides = array<i32>} : memref<25x32xf32, #tpu.memory_space<vmem>>, vector<8x32xf32>,
    %c8_57 = arith.constant 8 : index
    %c0_58 = arith.constant 0 : index
    %130 = vector.load %arg1[%c8_57, %c0_58] : memref<25x32xf32, #tpu.memory_space<vmem>>, vector<8x32xf32>
    tpu.vector_store %arg1[%c8_57, %c0_58], %39 {strides = array<i32>} : memref<25x32xf32, #tpu.memory_space<vmem>>, vector<8x32xf32>,
    %c16_59 = arith.constant 16 : index
    %c0_60 = arith.constant 0 : index
    %131 = vector.load %arg1[%c16_59, %c0_60] : memref<25x32xf32, #tpu.memory_space<vmem>>, vector<8x32xf32>
    tpu.vector_store %arg1[%c16_59, %c0_60], %128 {strides = array<i32>} : memref<25x32xf32, #tpu.memory_space<vmem>>, vector<8x32xf32>,
    %cst_61 = arith.constant 3.125000e-02 : f32
    %132 = vector.broadcast %cst_61 : f32 to vector<1x8xf32>
    %133 = arith.mulf %121, %132 : vector<1x8xf32>
    %134 = arith.negf %133 : vector<1x8xf32>
    %135 = math.exp %134 : vector<1x8xf32>
    %cst_62 = arith.constant 1.000000e+00 : f32
    %136 = vector.broadcast %cst_62 : f32 to vector<1x8xf32>
    %137 = arith.addf %136, %135 : vector<1x8xf32>
    %138 = arith.divf %136, %137 : vector<1x8xf32>
    %c256 = arith.constant 256 : index
    %c0_63 = arith.constant 0 : index
    %139 = vector.load %arg0[%c256, %c0_63] : memref<264x64xf32, #tpu.memory_space<vmem>>, vector<1x8xf32>
    %140 = math.log %138 : vector<1x8xf32>
    %cst_64 = arith.constant -1.000000e+02 : f32
    %141 = vector.broadcast %cst_64 : f32 to vector<1x8xf32>
    %142 = arith.maximumf %140, %141 : vector<1x8xf32>
    %cst_65 = arith.constant 1.000000e+00 : f32
    %143 = vector.broadcast %cst_65 : f32 to vector<1x8xf32>
    %144 = arith.subf %143, %138 : vector<1x8xf32>
    %145 = math.log %144 : vector<1x8xf32>
    %cst_66 = arith.constant -1.000000e+02 : f32
    %146 = vector.broadcast %cst_66 : f32 to vector<1x8xf32>
    %147 = arith.maximumf %145, %146 : vector<1x8xf32>
    %148 = arith.mulf %139, %142 : vector<1x8xf32>
    %cst_67 = arith.constant 1.000000e+00 : f32
    %149 = vector.broadcast %cst_67 : f32 to vector<1x8xf32>
    %150 = arith.subf %149, %139 : vector<1x8xf32>
    %151 = arith.mulf %150, %147 : vector<1x8xf32>
    %152 = arith.addf %148, %151 : vector<1x8xf32>
    %cst_68 = arith.constant 0.000000e+00 : f32
    %153 = vector.broadcast %cst_68 : f32 to vector<1x8xf32>
    %154 = arith.subf %153, %152 : vector<1x8xf32>
    %155 = vector.shape_cast %154 : vector<1x8xf32> to vector<1x1x8xf32>
    %cst_69 = arith.constant dense<0.000000e+00> : vector<1xf32>
    %156 = vector.multi_reduction <add>, %155, %cst_69 [1, 2] : vector<1x1x8xf32> to vector<1xf32>
    %157 = vector.shape_cast %156 : vector<1xf32> to vector<1x1x1xf32>
    %158 = vector.extract %157[0, 0, 0] : f32 from vector<1x1x1xf32>
    %159 = vector.broadcast %158 : f32 to vector<1x1xf32>
    %cst_70 = arith.constant 8.000000e+00 : f32
    %160 = vector.broadcast %cst_70 : f32 to vector<1x1xf32>
    %161 = arith.divf %159, %160 : vector<1x1xf32>
    %162 = vector.extract_strided_slice %39 {offsets = [0, 0], sizes = [7, 32], strides = [1, 1]} : vector<8x32xf32> to vector<7x32xf32>
    %c224 = arith.constant 224 : index
    %c0_71 = arith.constant 0 : index
    %163 = vector.load %arg0[%c224, %c0_71] : memref<264x64xf32, #tpu.memory_space<vmem>>, vector<32x64xf32>
    %cst_72 = arith.constant dense<0.000000e+00> : vector<7x64xf32>
    %164 = tpu.matmul %162, %163, %cst_72 {dimension_numbers = #tpu.dot_dimension_numbers<[1], [0], [0], [1], [0, 0, 1, 1], [], []>} : vector<7x32xf32>, vector<32x64xf32>, vector<7x64xf32> -> vector<7x64xf32>
    %cst_73 = arith.constant dense<0xFF800000> : vector<7xf32>
    %165 = vector.multi_reduction <maximumf>, %164, %cst_73 [1] : vector<7x64xf32> to vector<7xf32>
    %166 = vector.shape_cast %165 : vector<7xf32> to vector<7x1xf32>
    %167 = vector.broadcast %166 : vector<7x1xf32> to vector<7x64xf32>
    %168 = arith.subf %164, %167 : vector<7x64xf32>
    %169 = math.exp %168 : vector<7x64xf32>
    %cst_74 = arith.constant dense<0.000000e+00> : vector<7xf32>
    %170 = vector.multi_reduction <add>, %169, %cst_74 [1] : vector<7x64xf32> to vector<7xf32>
    %171 = vector.shape_cast %170 : vector<7xf32> to vector<7x1xf32>
    %172 = math.log %171 : vector<7x1xf32>
    %173 = arith.addf %172, %166 : vector<7x1xf32>
    %c257 = arith.constant 257 : index
    %c0_75 = arith.constant 0 : index
    %174 = vector.load %arg0[%c257, %c0_75] : memref<264x64xf32, #tpu.memory_space<vmem>>, vector<7x1xf32>
    %175 = arith.fptosi %174 : vector<7x1xf32> to vector<7x1xi32>
    %176 = tpu.iota {dimensions = array<i32: 1>} : vector<7x64xi32>
    %177 = vector.broadcast %175 : vector<7x1xi32> to vector<7x64xi32>
    %178 = arith.cmpi eq, %176, %177 : vector<7x64xi32>
    %cst_76 = arith.constant 0.000000e+00 : f32
    %179 = vector.broadcast %cst_76 : f32 to vector<7x64xf32>
    %180 = arith.select %178, %164, %179 : vector<7x64xi1>, vector<7x64xf32>
    %cst_77 = arith.constant dense<0.000000e+00> : vector<7xf32>
    %181 = vector.multi_reduction <add>, %180, %cst_77 [1] : vector<7x64xf32> to vector<7xf32>
    %182 = vector.shape_cast %181 : vector<7xf32> to vector<7x1xf32>
    %183 = arith.subf %173, %182 : vector<7x1xf32>
    %184 = vector.shape_cast %183 : vector<7x1xf32> to vector<1x7x1xf32>
    %cst_78 = arith.constant dense<0.000000e+00> : vector<1xf32>
    %185 = vector.multi_reduction <add>, %184, %cst_78 [1, 2] : vector<1x7x1xf32> to vector<1xf32>
    %186 = vector.shape_cast %185 : vector<1xf32> to vector<1x1x1xf32>
    %187 = vector.extract %186[0, 0, 0] : f32 from vector<1x1x1xf32>
    %188 = vector.broadcast %187 : f32 to vector<1x1xf32>
    %cst_79 = arith.constant 7.000000e+00 : f32
    %189 = vector.broadcast %cst_79 : f32 to vector<1x1xf32>
    %190 = arith.divf %188, %189 : vector<1x1xf32>
    %191 = tpu.iota {dimensions = array<i32: 1>} : vector<1x32xi32>
    %c0_i32 = arith.constant 0 : i32
    %192 = vector.broadcast %c0_i32 : i32 to vector<1x32xi32>
    %193 = arith.cmpi eq, %191, %192 : vector<1x32xi32>
    %cst_80 = arith.constant 0.000000e+00 : f32
    %194 = vector.shape_cast %190 : vector<1x1xf32> to vector<1x1xf32>
    %195 = vector.broadcast %194 : vector<1x1xf32> to vector<1x32xf32>
    %196 = vector.broadcast %cst_80 : f32 to vector<1x32xf32>
    %197 = arith.select %193, %195, %196 : vector<1x32xi1>, vector<1x32xf32>
    %c1_i32 = arith.constant 1 : i32
    %198 = vector.broadcast %c1_i32 : i32 to vector<1x32xi32>
    %199 = arith.cmpi eq, %191, %198 : vector<1x32xi32>
    %cst_81 = arith.constant 0.000000e+00 : f32
    %200 = vector.shape_cast %161 : vector<1x1xf32> to vector<1x1xf32>
    %201 = vector.broadcast %200 : vector<1x1xf32> to vector<1x32xf32>
    %202 = vector.broadcast %cst_81 : f32 to vector<1x32xf32>
    %203 = arith.select %199, %201, %202 : vector<1x32xi1>, vector<1x32xf32>
    %204 = arith.addf %197, %203 : vector<1x32xf32>
    %c24 = arith.constant 24 : index
    %c0_82 = arith.constant 0 : index
    %205 = vector.load %arg1[%c24, %c0_82] : memref<25x32xf32, #tpu.memory_space<vmem>>, vector<1x32xf32>
    tpu.vector_store %arg1[%c24, %c0_82], %204 {strides = array<i32>} : memref<25x32xf32, #tpu.memory_space<vmem>>, vector<1x32xf32>,
    return
  }
}

</mosaic_0001>

<llo_original>
// kernel: tpu_custom_call.1
$region0: #{tpu_custom_call.1}
  #allocation0 [shape = 'u32[]', space=smem, size = 0x4, offset = 0x4, fixed_abs, tag = 'smem constant byte address 0x4 - core index']
  #allocation1 [shape = 'u32[144,128]{1,0:T(1,128)}', space=vmem, size = 0x12000, scoped, tag = 'internal scratch']
  %s0 = inlined_call_operand.vmem [shape: f32[264,64], index: 0, kind: input, shape index: {}]
  %s1 = inlined_call_operand.hbm [shape: f32[25,32], index: 1, kind: output, shape index: {}]
  %s2 = sld [smem:[#allocation0]]
  $region14: #{tpu_custom_call.1} parent=0
    _
  %s4 = ssub.s32 1, %s2
  %s5 = scalar_select 0, %s4, %s2
  $region1: #{tpu_custom_call.1} parent=0
    #allocation2 [shape = 'u8[16384]{0}', space=vmem, size = 0x4000, scoped, tag = 'output window, operand 0, single buffered']
    #allocation3 [shape = 's32[1]{0}', space=sflag, size = 0x4, scoped, tag = 'scoped memory for tpu_custom_call.1']
    %6 = vsyncpa [#allocation3], 0
    // Predicated region
    $region2: #{tpu_custom_call.1} parent=1 // pred_check
      _
    $region3: #{tpu_custom_call.1} parent=1 // pred_check_branch
      %8 = sbr.rel (0) target = $region5
    $region4: #{tpu_custom_call.1} parent=1 // pred_region
      _
    $region5: #{tpu_custom_call.1} parent=1 // pred_fallthru
      _
    %v9 = vld [vmem:[%s0] sm:$0xff]
    %v10 = vld [vmem:[%s0 + $0x8] sm:$0xff]
    %v11 = vld [vmem:[%s0 + $0x10] sm:$0xff]
    %v12 = vld [vmem:[%s0 + $0x18] sm:$0xff]
    %vm13 = vcmask 130048
    %v15 = vsel %vm13, %v10, 0
    %17 = vmatprep.subr.mxu0 0.0
    %18 = vmatpush1.msra.mxu0 %v11
    %19 = vmatprep.subr.mxu0 0.0
    %20 = vmatpush1.msra.mxu0 %v12
    %21 = vmatprep.subr.mxu0 0.0
    %22 = vmatpush1.msra.mxu0 0.0
    %23 = vmatprep.subr.mxu0 0.0
    %24 = vmatpush1.msra.mxu0 0.0
    %25 = vmatprep.subr.mxu0 0.0
    %26 = vmatpush1.msra.mxu0 0.0
    %27 = vmatprep.subr.mxu0 0.0
    %28 = vmatpush1.msra.mxu0 0.0
    %29 = vmatprep.subr.mxu0 0.0
    %30 = vmatpush1.msra.mxu0 0.0
    %31 = vmatprep.subr.mxu0 0.0
    %32 = vmatpush1.msra.mxu0 0.0
    %33 = vmatprep.subr.mxu0 0.0
    %34 = vmatpush1.msra.mxu0 0.0
    %35 = vmatprep.subr.mxu0 0.0
    %36 = vmatpush1.msra.mxu0 0.0
    %37 = vmatprep.subr.mxu0 0.0
    %38 = vmatpush1.msra.mxu0 0.0
    %39 = vmatprep.subr.mxu0 0.0
    %40 = vmatpush1.msra.mxu0 0.0
    %41 = vmatprep.subr.mxu0 0.0
    %42 = vmatpush1.msra.mxu0 0.0
    %43 = vmatprep.subr.mxu0 0.0
    %44 = vmatpush1.msra.mxu0 0.0
    %45 = vmatprep.subr.mxu0 0.0
    %46 = vmatpush1.msra.mxu0 0.0
    %47 = vmatprep.subr.mxu0 0.0
    %48 = vmatpush1.msra.mxu0 0.0
    %49 = vmatprep.subr.mxu0 0.0
    %50 = vmatpush1.msra.mxu0 0.0
    %51 = vmatprep.subr.mxu0 0.0
    %52 = vmatpush1.msra.mxu0 0.0
    %53 = vmatprep.subr.mxu0 0.0
    %54 = vmatpush1.msra.mxu0 0.0
    %55 = vmatprep.subr.mxu0 0.0
    %56 = vmatpush1.msra.mxu0 0.0
    %57 = vmatprep.subr.mxu0 0.0
    %58 = vmatpush1.msra.mxu0 0.0
    %59 = vmatprep.subr.mxu0 0.0
    %60 = vmatpush1.msra.mxu0 0.0
    %61 = vmatprep.subr.mxu0 0.0
    %62 = vmatpush1.msra.mxu0 0.0
    %63 = vmatprep.subr.mxu0 0.0
    %64 = vmatpush1.msra.mxu0 0.0
    %65 = vmatprep.subr.mxu0 0.0
    %66 = vmatpush1.msra.mxu0 0.0
    %67 = vmatprep.subr.mxu0 0.0
    %68 = vmatpush1.msra.mxu0 0.0
    %69 = vmatprep.subr.mxu0 0.0
    %70 = vmatpush1.msra.mxu0 0.0
    %71 = vmatprep.subr.mxu0 0.0
    %72 = vmatpush1.msra.mxu0 0.0
    %73 = vmatprep.subr.mxu0 0.0
    %74 = vmatpush1.msra.mxu0 0.0
    %75 = vmatprep.subr.mxu0 0.0
    %76 = vmatpush1.msra.mxu0 0.0
    %77 = vmatprep.subr.mxu0 0.0
    %78 = vmatpush1.msra.mxu0 0.0
    %79 = vmatprep.subr.mxu0 0.0
    %80 = vmatpush1.msra.mxu0 0.0
    %81 = vmatprep.mubr.f32.mxu0 0.0
    %82 = vmatmul.mubr.f32.gmra.mrb[0].mxu0 %v15
    %v83 = vpop.f32.mrb[0].mxu0
    %v84 = vadd.f32 0.0, %v83
    %v85 = vpop.f32.mrb[0].mxu0
    %86 = vdwg.mxu0
    %v87 = vld [vmem:[%s0 + $0x20] sm:$0x1]
    %v88 = vlaneseq
    %v89 = vshrl.u32 %v88, 7
    %v90 = vsub.s32 0, %v89
    %v91 = vrot.slane %v87, %v90
    %vm92 = vcmask 64512
    %v94 = vsel %vm92, %v9, 0
    %96 = vmatprep.subr.mxu0 0.0
    %97 = vmatpush1.msra.mxu0 %v84
    %98 = vmatprep.subr.mxu0 0.0
    %99 = vmatpush1.msra.mxu0 0.0
    %100 = vmatprep.subr.mxu0 0.0
    %101 = vmatpush1.msra.mxu0 0.0
    %102 = vmatprep.subr.mxu0 0.0
    %103 = vmatpush1.msra.mxu0 0.0
    %104 = vmatprep.subr.mxu0 0.0
    %105 = vmatpush1.msra.mxu0 0.0
    %106 = vmatprep.subr.mxu0 0.0
    %107 = vmatpush1.msra.mxu0 0.0
    %108 = vmatprep.subr.mxu0 0.0
    %109 = vmatpush1.msra.mxu0 0.0
    %110 = vmatprep.subr.mxu0 0.0
    %111 = vmatpush1.msra.mxu0 0.0
    %112 = vmatprep.subr.mxu0 0.0
    %113 = vmatpush1.msra.mxu0 0.0
    %114 = vmatprep.subr.mxu0 0.0
    %115 = vmatpush1.msra.mxu0 0.0
    %116 = vmatprep.subr.mxu0 0.0
    %117 = vmatpush1.msra.mxu0 0.0
    %118 = vmatprep.subr.mxu0 0.0
    %119 = vmatpush1.msra.mxu0 0.0
    %120 = vmatprep.subr.mxu0 0.0
    %121 = vmatpush1.msra.mxu0 0.0
    %122 = vmatprep.subr.mxu0 0.0
    %123 = vmatpush1.msra.mxu0 0.0
    %124 = vmatprep.subr.mxu0 0.0
    %125 = vmatpush1.msra.mxu0 0.0
    %126 = vmatprep.subr.mxu0 0.0
    %127 = vmatpush1.msra.mxu0 0.0
    %128 = vmatprep.subr.mxu0 0.0
    %129 = vmatpush1.msra.mxu0 0.0
    %130 = vmatprep.subr.mxu0 0.0
    %131 = vmatpush1.msra.mxu0 0.0
    %132 = vmatprep.subr.mxu0 0.0
    %133 = vmatpush1.msra.mxu0 0.0
    %134 = vmatprep.subr.mxu0 0.0
    %135 = vmatpush1.msra.mxu0 0.0
    %136 = vmatprep.subr.mxu0 0.0
    %137 = vmatpush1.msra.mxu0 0.0
    %138 = vmatprep.subr.mxu0 0.0
    %139 = vmatpush1.msra.mxu0 0.0
    %140 = vmatprep.subr.mxu0 0.0
    %141 = vmatpush1.msra.mxu0 0.0
    %142 = vmatprep.subr.mxu0 0.0
    %143 = vmatpush1.msra.mxu0 0.0
    %144 = vmatprep.subr.mxu0 0.0
    %145 = vmatpush1.msra.mxu0 0.0
    %146 = vmatprep.subr.mxu0 0.0
    %147 = vmatpush1.msra.mxu0 0.0
    %148 = vmatprep.subr.mxu0 0.0
    %149 = vmatpush1.msra.mxu0 0.0
    %150 = vmatprep.subr.mxu0 0.0
    %151 = vmatpush1.msra.mxu0 0.0
    %152 = vmatprep.subr.mxu0 0.0
    %153 = vmatpush1.msra.mxu0 0.0
    %154 = vmatprep.subr.mxu0 0.0
    %155 = vmatpush1.msra.mxu0 0.0
    %156 = vmatprep.subr.mxu0 0.0
    %157 = vmatpush1.msra.mxu0 0.0
    %158 = vmatprep.subr.mxu0 0.0
    %159 = vmatpush1.msra.mxu0 0.0
    %160 = vmatprep.mubr.f32.mxu0 0.0
    %161 = vmatmul.mubr.f32.gmra.mrb[0].mxu0 %v94
    %v162 = vpop.f32.mrb[0].mxu0
    %v163 = vadd.f32 %v91, %v162
    %v164 = vpop.f32.mrb[0].mxu0
    %165 = vdwg.mxu0
    %v166 = vmax.f32 %v163, 0.0
    %v167 = vld [vmem:[%s0 + $0x21] sm:$0xff]
    %v168 = vld [vmem:[%s0 + $0x29] sm:$0xff]
    %v170 = vsel %vm13, %v166, 0
    %172 = vmatprep.subr.mxu0 0.0
    %173 = vmatpush1.msra.mxu0 %v167
    %174 = vmatprep.subr.mxu0 0.0
    %175 = vmatpush1.msra.mxu0 %v168
    %176 = vmatprep.subr.mxu0 0.0
    %177 = vmatpush1.msra.mxu0 0.0
    %178 = vmatprep.subr.mxu0 0.0
    %179 = vmatpush1.msra.mxu0 0.0
    %180 = vmatprep.subr.mxu0 0.0
    %181 = vmatpush1.msra.mxu0 0.0
    %182 = vmatprep.subr.mxu0 0.0
    %183 = vmatpush1.msra.mxu0 0.0
    %184 = vmatprep.subr.mxu0 0.0
    %185 = vmatpush1.msra.mxu0 0.0
    %186 = vmatprep.subr.mxu0 0.0
    %187 = vmatpush1.msra.mxu0 0.0
    %188 = vmatprep.subr.mxu0 0.0
    %189 = vmatpush1.msra.mxu0 0.0
    %190 = vmatprep.subr.mxu0 0.0
    %191 = vmatpush1.msra.mxu0 0.0
    %192 = vmatprep.subr.mxu0 0.0
    %193 = vmatpush1.msra.mxu0 0.0
    %194 = vmatprep.subr.mxu0 0.0
    %195 = vmatpush1.msra.mxu0 0.0
    %196 = vmatprep.subr.mxu0 0.0
    %197 = vmatpush1.msra.mxu0 0.0
    %198 = vmatprep.subr.mxu0 0.0
    %199 = vmatpush1.msra.mxu0 0.0
    %200 = vmatprep.subr.mxu0 0.0
    %201 = vmatpush1.msra.mxu0 0.0
    %202 = vmatprep.subr.mxu0 0.0
    %203 = vmatpush1.msra.mxu0 0.0
    %204 = vmatprep.subr.mxu0 0.0
    %205 = vmatpush1.msra.mxu0 0.0
    %206 = vmatprep.subr.mxu0 0.0
    %207 = vmatpush1.msra.mxu0 0.0
    %208 = vmatprep.subr.mxu0 0.0
    %209 = vmatpush1.msra.mxu0 0.0
    %210 = vmatprep.subr.mxu0 0.0
    %211 = vmatpush1.msra.mxu0 0.0
    %212 = vmatprep.subr.mxu0 0.0
    %213 = vmatpush1.msra.mxu0 0.0
    %214 = vmatprep.subr.mxu0 0.0
    %215 = vmatpush1.msra.mxu0 0.0
    %216 = vmatprep.subr.mxu0 0.0
    %217 = vmatpush1.msra.mxu0 0.0
    %218 = vmatprep.subr.mxu0 0.0
    %219 = vmatpush1.msra.mxu0 0.0
    %220 = vmatprep.subr.mxu0 0.0
    %221 = vmatpush1.msra.mxu0 0.0
    %222 = vmatprep.subr.mxu0 0.0
    %223 = vmatpush1.msra.mxu0 0.0
    %224 = vmatprep.subr.mxu0 0.0
    %225 = vmatpush1.msra.mxu0 0.0
    %226 = vmatprep.subr.mxu0 0.0
    %227 = vmatpush1.msra.mxu0 0.0
    %228 = vmatprep.subr.mxu0 0.0
    %229 = vmatpush1.msra.mxu0 0.0
    %230 = vmatprep.subr.mxu0 0.0
    %231 = vmatpush1.msra.mxu0 0.0
    %232 = vmatprep.subr.mxu0 0.0
    %233 = vmatpush1.msra.mxu0 0.0
    %234 = vmatprep.subr.mxu0 0.0
    %235 = vmatpush1.msra.mxu0 0.0
    %236 = vmatprep.mubr.f32.mxu0 0.0
    %237 = vmatmul.mubr.f32.gmra.mrb[0].mxu0 %v170
    %v238 = vpop.f32.mrb[0].mxu0
    %v239 = vadd.f32 0.0, %v238
    %v240 = vpop.f32.mrb[0].mxu0
    %241 = vdwg.mxu0
    %v242 = vld [vmem:[%s0 + $0x31] sm:$0x1]
    %v243 = vlaneseq
    %v244 = vshrl.u32 %v243, 7
    %v245 = vsub.s32 0, %v244
    %v246 = vrot.slane %v242, %v245
    %247 = vmatprep.subr.mxu0 0.0
    %248 = vmatpush1.msra.mxu0 %v239
    %249 = vmatprep.subr.mxu0 0.0
    %250 = vmatpush1.msra.mxu0 0.0
    %251 = vmatprep.subr.mxu0 0.0
    %252 = vmatpush1.msra.mxu0 0.0
    %253 = vmatprep.subr.mxu0 0.0
    %254 = vmatpush1.msra.mxu0 0.0
    %255 = vmatprep.subr.mxu0 0.0
    %256 = vmatpush1.msra.mxu0 0.0
    %257 = vmatprep.subr.mxu0 0.0
    %258 = vmatpush1.msra.mxu0 0.0
    %259 = vmatprep.subr.mxu0 0.0
    %260 = vmatpush1.msra.mxu0 0.0
    %261 = vmatprep.subr.mxu0 0.0
    %262 = vmatpush1.msra.mxu0 0.0
    %263 = vmatprep.subr.mxu0 0.0
    %264 = vmatpush1.msra.mxu0 0.0
    %265 = vmatprep.subr.mxu0 0.0
    %266 = vmatpush1.msra.mxu0 0.0
    %267 = vmatprep.subr.mxu0 0.0
    %268 = vmatpush1.msra.mxu0 0.0
    %269 = vmatprep.subr.mxu0 0.0
    %270 = vmatpush1.msra.mxu0 0.0
    %271 = vmatprep.subr.mxu0 0.0
    %272 = vmatpush1.msra.mxu0 0.0
    %273 = vmatprep.subr.mxu0 0.0
    %274 = vmatpush1.msra.mxu0 0.0
    %275 = vmatprep.subr.mxu0 0.0
    %276 = vmatpush1.msra.mxu0 0.0
    %277 = vmatprep.subr.mxu0 0.0
    %278 = vmatpush1.msra.mxu0 0.0
    %279 = vmatprep.subr.mxu0 0.0
    %280 = vmatpush1.msra.mxu0 0.0
    %281 = vmatprep.subr.mxu0 0.0
    %282 = vmatpush1.msra.mxu0 0.0
    %283 = vmatprep.subr.mxu0 0.0
    %284 = vmatpush1.msra.mxu0 0.0
    %285 = vmatprep.subr.mxu0 0.0
    %286 = vmatpush1.msra.mxu0 0.0
    %287 = vmatprep.subr.mxu0 0.0
    %288 = vmatpush1.msra.mxu0 0.0
    %289 = vmatprep.subr.mxu0 0.0
    %290 = vmatpush1.msra.mxu0 0.0
    %291 = vmatprep.subr.mxu0 0.0
    %292 = vmatpush1.msra.mxu0 0.0
    %293 = vmatprep.subr.mxu0 0.0
    %294 = vmatpush1.msra.mxu0 0.0
    %295 = vmatprep.subr.mxu0 0.0
    %296 = vmatpush1.msra.mxu0 0.0
    %297 = vmatprep.subr.mxu0 0.0
    %298 = vmatpush1.msra.mxu0 0.0
    %299 = vmatprep.subr.mxu0 0.0
    %300 = vmatpush1.msra.mxu0 0.0
    %301 = vmatprep.subr.mxu0 0.0
    %302 = vmatpush1.msra.mxu0 0.0
    %303 = vmatprep.subr.mxu0 0.0
    %304 = vmatpush1.msra.mxu0 0.0
    %305 = vmatprep.subr.mxu0 0.0
    %306 = vmatpush1.msra.mxu0 0.0
    %307 = vmatprep.subr.mxu0 0.0
    %308 = vmatpush1.msra.mxu0 0.0
    %309 = vmatprep.subr.mxu0 0.0
    %310 = vmatpush1.msra.mxu0 0.0
    %311 = vmatprep.mubr.f32.mxu0 0.0
    %312 = vmatmul.mubr.f32.gmra.mrb[0].mxu0 %v94
    %v313 = vpop.f32.mrb[0].mxu0
    %v314 = vadd.f32 %v246, %v313
    %v315 = vpop.f32.mrb[0].mxu0
    %316 = vdwg.mxu0
    %v317 = vmul.f32 %v166, 0.6
    %v318 = vmul.f32 %v314, 0.4
    %v319 = vadd.f32 %v317, %v318
    %v320 = vmax.f32 %v319, 0.0
    %v321 = vld [vmem:[%s0 + $0x32] sm:$0xff]
    %v322 = vld [vmem:[%s0 + $0x3a] sm:$0xff]
    %v324 = vsel %vm13, %v320, 0
    %326 = vmatprep.subr.mxu0 0.0
    %327 = vmatpush1.msra.mxu0 %v321
    %328 = vmatprep.subr.mxu0 0.0
    %329 = vmatpush1.msra.mxu0 %v322
    %330 = vmatprep.subr.mxu0 0.0
    %331 = vmatpush1.msra.mxu0 0.0
    %332 = vmatprep.subr.mxu0 0.0
    %333 = vmatpush1.msra.mxu0 0.0
    %334 = vmatprep.subr.mxu0 0.0
    %335 = vmatpush1.msra.mxu0 0.0
    %336 = vmatprep.subr.mxu0 0.0
    %337 = vmatpush1.msra.mxu0 0.0
    %338 = vmatprep.subr.mxu0 0.0
    %339 = vmatpush1.msra.mxu0 0.0
    %340 = vmatprep.subr.mxu0 0.0
    %341 = vmatpush1.msra.mxu0 0.0
    %342 = vmatprep.subr.mxu0 0.0
    %343 = vmatpush1.msra.mxu0 0.0
    %344 = vmatprep.subr.mxu0 0.0
    %345 = vmatpush1.msra.mxu0 0.0
    %346 = vmatprep.subr.mxu0 0.0
    %347 = vmatpush1.msra.mxu0 0.0
    %348 = vmatprep.subr.mxu0 0.0
    %349 = vmatpush1.msra.mxu0 0.0
    %350 = vmatprep.subr.mxu0 0.0
    %351 = vmatpush1.msra.mxu0 0.0
    %352 = vmatprep.subr.mxu0 0.0
    %353 = vmatpush1.msra.mxu0 0.0
    %354 = vmatprep.subr.mxu0 0.0
    %355 = vmatpush1.msra.mxu0 0.0
    %356 = vmatprep.subr.mxu0 0.0
    %357 = vmatpush1.msra.mxu0 0.0
    %358 = vmatprep.subr.mxu0 0.0
    %359 = vmatpush1.msra.mxu0 0.0
    %360 = vmatprep.subr.mxu0 0.0
    %361 = vmatpush1.msra.mxu0 0.0
    %362 = vmatprep.subr.mxu0 0.0
    %363 = vmatpush1.msra.mxu0 0.0
    %364 = vmatprep.subr.mxu0 0.0
    %365 = vmatpush1.msra.mxu0 0.0
    %366 = vmatprep.subr.mxu0 0.0
    %367 = vmatpush1.msra.mxu0 0.0
    %368 = vmatprep.subr.mxu0 0.0
    %369 = vmatpush1.msra.mxu0 0.0
    %370 = vmatprep.subr.mxu0 0.0
    %371 = vmatpush1.msra.mxu0 0.0
    %372 = vmatprep.subr.mxu0 0.0
    %373 = vmatpush1.msra.mxu0 0.0
    %374 = vmatprep.subr.mxu0 0.0
    %375 = vmatpush1.msra.mxu0 0.0
    %376 = vmatprep.subr.mxu0 0.0
    %377 = vmatpush1.msra.mxu0 0.0
    %378 = vmatprep.subr.mxu0 0.0
    %379 = vmatpush1.msra.mxu0 0.0
    %380 = vmatprep.subr.mxu0 0.0
    %381 = vmatpush1.msra.mxu0 0.0
    %382 = vmatprep.subr.mxu0 0.0
    %383 = vmatpush1.msra.mxu0 0.0
    %384 = vmatprep.subr.mxu0 0.0
    %385 = vmatpush1.msra.mxu0 0.0
    %386 = vmatprep.subr.mxu0 0.0
    %387 = vmatpush1.msra.mxu0 0.0
    %388 = vmatprep.subr.mxu0 0.0
    %389 = vmatpush1.msra.mxu0 0.0
    %390 = vmatprep.mubr.f32.mxu0 0.0
    %391 = vmatmul.mubr.f32.gmra.mrb[0].mxu0 %v324
    %v392 = vpop.f32.mrb[0].mxu0
    %v393 = vadd.f32 0.0, %v392
    %v394 = vpop.f32.mrb[0].mxu0
    %395 = vdwg.mxu0
    %v396 = vld [vmem:[%s0 + $0x42] sm:$0x1]
    %v397 = vlaneseq
    %v398 = vshrl.u32 %v397, 7
    %v399 = vsub.s32 0, %v398
    %v400 = vrot.slane %v396, %v399
    %401 = vmatprep.subr.mxu0 0.0
    %402 = vmatpush1.msra.mxu0 %v393
    %403 = vmatprep.subr.mxu0 0.0
    %404 = vmatpush1.msra.mxu0 0.0
    %405 = vmatprep.subr.mxu0 0.0
    %406 = vmatpush1.msra.mxu0 0.0
    %407 = vmatprep.subr.mxu0 0.0
    %408 = vmatpush1.msra.mxu0 0.0
    %409 = vmatprep.subr.mxu0 0.0
    %410 = vmatpush1.msra.mxu0 0.0
    %411 = vmatprep.subr.mxu0 0.0
    %412 = vmatpush1.msra.mxu0 0.0
    %413 = vmatprep.subr.mxu0 0.0
    %414 = vmatpush1.msra.mxu0 0.0
    %415 = vmatprep.subr.mxu0 0.0
    %416 = vmatpush1.msra.mxu0 0.0
    %417 = vmatprep.subr.mxu0 0.0
    %418 = vmatpush1.msra.mxu0 0.0
    %419 = vmatprep.subr.mxu0 0.0
    %420 = vmatpush1.msra.mxu0 0.0
    %421 = vmatprep.subr.mxu0 0.0
    %422 = vmatpush1.msra.mxu0 0.0
    %423 = vmatprep.subr.mxu0 0.0
    %424 = vmatpush1.msra.mxu0 0.0
    %425 = vmatprep.subr.mxu0 0.0
    %426 = vmatpush1.msra.mxu0 0.0
    %427 = vmatprep.subr.mxu0 0.0
    %428 = vmatpush1.msra.mxu0 0.0
    %429 = vmatprep.subr.mxu0 0.0
    %430 = vmatpush1.msra.mxu0 0.0
    %431 = vmatprep.subr.mxu0 0.0
    %432 = vmatpush1.msra.mxu0 0.0
    %433 = vmatprep.subr.mxu0 0.0
    %434 = vmatpush1.msra.mxu0 0.0
    %435 = vmatprep.subr.mxu0 0.0
    %436 = vmatpush1.msra.mxu0 0.0
    %437 = vmatprep.subr.mxu0 0.0
    %438 = vmatpush1.msra.mxu0 0.0
    %439 = vmatprep.subr.mxu0 0.0
    %440 = vmatpush1.msra.mxu0 0.0
    %441 = vmatprep.subr.mxu0 0.0
    %442 = vmatpush1.msra.mxu0 0.0
    %443 = vmatprep.subr.mxu0 0.0
    %444 = vmatpush1.msra.mxu0 0.0
    %445 = vmatprep.subr.mxu0 0.0
    %446 = vmatpush1.msra.mxu0 0.0
    %447 = vmatprep.subr.mxu0 0.0
    %448 = vmatpush1.msra.mxu0 0.0
    %449 = vmatprep.subr.mxu0 0.0
    %450 = vmatpush1.msra.mxu0 0.0
    %451 = vmatprep.subr.mxu0 0.0
    %452 = vmatpush1.msra.mxu0 0.0
    %453 = vmatprep.subr.mxu0 0.0
    %454 = vmatpush1.msra.mxu0 0.0
    %455 = vmatprep.subr.mxu0 0.0
    %456 = vmatpush1.msra.mxu0 0.0
    %457 = vmatprep.subr.mxu0 0.0
    %458 = vmatpush1.msra.mxu0 0.0
    %459 = vmatprep.subr.mxu0 0.0
    %460 = vmatpush1.msra.mxu0 0.0
    %461 = vmatprep.subr.mxu0 0.0
    %462 = vmatpush1.msra.mxu0 0.0
    %463 = vmatprep.subr.mxu0 0.0
    %464 = vmatpush1.msra.mxu0 0.0
    %465 = vmatprep.mubr.f32.mxu0 0.0
    %466 = vmatmul.mubr.f32.gmra.mrb[0].mxu0 %v94
    %v467 = vpop.f32.mrb[0].mxu0
    %v468 = vadd.f32 %v400, %v467
    %v469 = vpop.f32.mrb[0].mxu0
    %470 = vdwg.mxu0
    %v471 = vld [vmem:[%s0 + $0x43] sm:$0xff]
    %v472 = vld [vmem:[%s0 + $0x4b] sm:$0xff]
    %v473 = vld [vmem:[%s0 + $0x53] sm:$0x1]
    %v474 = vlaneseq
    %v475 = vshrl.u32 %v474, 7
    %v476 = vsub.s32 0, %v475
    %v477 = vrot.slane %v473, %v476
    %478 = vmatprep.subr.mxu0 0.0
    %479 = vmatpush1.msra.mxu0 %v471
    %480 = vmatprep.subr.mxu0 0.0
    %481 = vmatpush1.msra.mxu0 %v472
    %482 = vmatprep.subr.mxu0 0.0
    %483 = vmatpush1.msra.mxu0 0.0
    %484 = vmatprep.subr.mxu0 0.0
    %485 = vmatpush1.msra.mxu0 0.0
    %486 = vmatprep.subr.mxu0 0.0
    %487 = vmatpush1.msra.mxu0 0.0
    %488 = vmatprep.subr.mxu0 0.0
    %489 = vmatpush1.msra.mxu0 0.0
    %490 = vmatprep.subr.mxu0 0.0
    %491 = vmatpush1.msra.mxu0 0.0
    %492 = vmatprep.subr.mxu0 0.0
    %493 = vmatpush1.msra.mxu0 0.0
    %494 = vmatprep.subr.mxu0 0.0
    %495 = vmatpush1.msra.mxu0 0.0
    %496 = vmatprep.subr.mxu0 0.0
    %497 = vmatpush1.msra.mxu0 0.0
    %498 = vmatprep.subr.mxu0 0.0
    %499 = vmatpush1.msra.mxu0 0.0
    %500 = vmatprep.subr.mxu0 0.0
    %501 = vmatpush1.msra.mxu0 0.0
    %502 = vmatprep.subr.mxu0 0.0
    %503 = vmatpush1.msra.mxu0 0.0
    %504 = vmatprep.subr.mxu0 0.0
    %505 = vmatpush1.msra.mxu0 0.0
    %506 = vmatprep.subr.mxu0 0.0
    %507 = vmatpush1.msra.mxu0 0.0
    %508 = vmatprep.subr.mxu0 0.0
    %509 = vmatpush1.msra.mxu0 0.0
    %510 = vmatprep.subr.mxu0 0.0
    %511 = vmatpush1.msra.mxu0 0.0
    %512 = vmatprep.subr.mxu0 0.0
    %513 = vmatpush1.msra.mxu0 0.0
    %514 = vmatprep.subr.mxu0 0.0
    %515 = vmatpush1.msra.mxu0 0.0
    %516 = vmatprep.subr.mxu0 0.0
    %517 = vmatpush1.msra.mxu0 0.0
    %518 = vmatprep.subr.mxu0 0.0
    %519 = vmatpush1.msra.mxu0 0.0
    %520 = vmatprep.subr.mxu0 0.0
    %521 = vmatpush1.msra.mxu0 0.0
    %522 = vmatprep.subr.mxu0 0.0
    %523 = vmatpush1.msra.mxu0 0.0
    %524 = vmatprep.subr.mxu0 0.0
    %525 = vmatpush1.msra.mxu0 0.0
    %526 = vmatprep.subr.mxu0 0.0
    %527 = vmatpush1.msra.mxu0 0.0
    %528 = vmatprep.subr.mxu0 0.0
    %529 = vmatpush1.msra.mxu0 0.0
    %530 = vmatprep.subr.mxu0 0.0
    %531 = vmatpush1.msra.mxu0 0.0
    %532 = vmatprep.subr.mxu0 0.0
    %533 = vmatpush1.msra.mxu0 0.0
    %534 = vmatprep.subr.mxu0 0.0
    %535 = vmatpush1.msra.mxu0 0.0
    %536 = vmatprep.subr.mxu0 0.0
    %537 = vmatpush1.msra.mxu0 0.0
    %538 = vmatprep.subr.mxu0 0.0
    %539 = vmatpush1.msra.mxu0 0.0
    %540 = vmatprep.subr.mxu0 0.0
    %541 = vmatpush1.msra.mxu0 0.0
    %542 = vmatprep.mubr.f32.mxu0 0.0
    %543 = vmatmul.mubr.f32.gmra.mrb[0].mxu0 %v324
    %v544 = vpop.f32.mrb[0].mxu0
    %v545 = vadd.f32 %v477, %v544
    %v546 = vpop.f32.mrb[0].mxu0
    %547 = vdwg.mxu0
    %v548 = vmul.f32 %v545, 0.6
    %v549 = vmul.f32 %v468, 0.4
    %v550 = vadd.f32 %v548, %v549
    %v551 = vld [vmem:[%s0 + $0x54] sm:$0xff]
    %v552 = vld [vmem:[%s0 + $0x5c] sm:$0xff]
    %v553 = vld [vmem:[%s0 + $0x64] sm:$0xff]
    %v554 = vld [vmem:[%s0 + $0x6c] sm:$0xff]
    %v555 = vld [vmem:[%s0 + $0x74] sm:$0xff]
    %v556 = vld [vmem:[%s0 + $0x7c] sm:$0x1]
    %v557 = vlaneseq
    %v558 = vshrl.u32 %v557, 7
    %v559 = vsub.s32 0, %v558
    %v560 = vrot.slane %v556, %v559
    %vm561 = vcmask 261120
    %v563 = vsel %vm561, %v551, 0
    %565 = vmatprep.subr.mxu0 0.0
    %566 = vmatpush1.msra.mxu0 %v552
    %567 = vmatprep.subr.mxu0 0.0
    %568 = vmatpush1.msra.mxu0 %v553
    %569 = vmatprep.subr.mxu0 0.0
    %570 = vmatpush1.msra.mxu0 %v554
    %571 = vmatprep.subr.mxu0 0.0
    %572 = vmatpush1.msra.mxu0 %v555
    %573 = vmatprep.subr.mxu0 0.0
    %574 = vmatpush1.msra.mxu0 0.0
    %575 = vmatprep.subr.mxu0 0.0
    %576 = vmatpush1.msra.mxu0 0.0
    %577 = vmatprep.subr.mxu0 0.0
    %578 = vmatpush1.msra.mxu0 0.0
    %579 = vmatprep.subr.mxu0 0.0
    %580 = vmatpush1.msra.mxu0 0.0
    %581 = vmatprep.subr.mxu0 0.0
    %582 = vmatpush1.msra.mxu0 0.0
    %583 = vmatprep.subr.mxu0 0.0
    %584 = vmatpush1.msra.mxu0 0.0
    %585 = vmatprep.subr.mxu0 0.0
    %586 = vmatpush1.msra.mxu0 0.0
    %587 = vmatprep.subr.mxu0 0.0
    %588 = vmatpush1.msra.mxu0 0.0
    %589 = vmatprep.subr.mxu0 0.0
    %590 = vmatpush1.msra.mxu0 0.0
    %591 = vmatprep.subr.mxu0 0.0
    %592 = vmatpush1.msra.mxu0 0.0
    %593 = vmatprep.subr.mxu0 0.0
    %594 = vmatpush1.msra.mxu0 0.0
    %595 = vmatprep.subr.mxu0 0.0
    %596 = vmatpush1.msra.mxu0 0.0
    %597 = vmatprep.subr.mxu0 0.0
    %598 = vmatpush1.msra.mxu0 0.0
    %599 = vmatprep.subr.mxu0 0.0
    %600 = vmatpush1.msra.mxu0 0.0
    %601 = vmatprep.subr.mxu0 0.0
    %602 = vmatpush1.msra.mxu0 0.0
    %603 = vmatprep.subr.mxu0 0.0
    %604 = vmatpush1.msra.mxu0 0.0
    %605 = vmatprep.subr.mxu0 0.0
    %606 = vmatpush1.msra.mxu0 0.0
    %607 = vmatprep.subr.mxu0 0.0
    %608 = vmatpush1.msra.mxu0 0.0
    %609 = vmatprep.subr.mxu0 0.0
    %610 = vmatpush1.msra.mxu0 0.0
    %611 = vmatprep.subr.mxu0 0.0
    %612 = vmatpush1.msra.mxu0 0.0
    %613 = vmatprep.subr.mxu0 0.0
    %614 = vmatpush1.msra.mxu0 0.0
    %615 = vmatprep.subr.mxu0 0.0
    %616 = vmatpush1.msra.mxu0 0.0
    %617 = vmatprep.subr.mxu0 0.0
    %618 = vmatpush1.msra.mxu0 0.0
    %619 = vmatprep.subr.mxu0 0.0
    %620 = vmatpush1.msra.mxu0 0.0
    %621 = vmatprep.subr.mxu0 0.0
    %622 = vmatpush1.msra.mxu0 0.0
    %623 = vmatprep.subr.mxu0 0.0
    %624 = vmatpush1.msra.mxu0 0.0
    %625 = vmatprep.subr.mxu0 0.0
    %626 = vmatpush1.msra.mxu0 0.0
    %627 = vmatprep.subr.mxu0 0.0
    %628 = vmatpush1.msra.mxu0 0.0
    %629 = vmatprep.mubr.f32.mxu0 0.0
    %630 = vmatmul.mubr.f32.gmra.mrb[0].mxu0 %v563
    %v631 = vpop.f32.mrb[0].mxu0
    %v632 = vadd.f32 %v560, %v631
    %v633 = vpop.f32.mrb[0].mxu0
    %634 = vdwg.mxu0
    %v635 = vld [vmem:[%s0 + $0x7d] sm:$0xff]
    %v636 = vld [vmem:[%s0 + $0x85] sm:$0xff]
    %v637 = vld [vmem:[%s0 + $0x8d] sm:$0xff]
    %v638 = vld [vmem:[%s0 + $0x95] sm:$0xff]
    %v639 = vld [vmem:[%s0 + $0x9d] sm:$0x1]
    %v640 = vlaneseq
    %v641 = vshrl.u32 %v640, 7
    %v642 = vsub.s32 0, %v641
    %v643 = vrot.slane %v639, %v642
    %v645 = vsel %vm561, %v550, 0
    %647 = vmatprep.subr.mxu0 0.0
    %648 = vmatpush1.msra.mxu0 %v635
    %649 = vmatprep.subr.mxu0 0.0
    %650 = vmatpush1.msra.mxu0 %v636
    %651 = vmatprep.subr.mxu0 0.0
    %652 = vmatpush1.msra.mxu0 %v637
    %653 = vmatprep.subr.mxu0 0.0
    %654 = vmatpush1.msra.mxu0 %v638
    %655 = vmatprep.subr.mxu0 0.0
    %656 = vmatpush1.msra.mxu0 0.0
    %657 = vmatprep.subr.mxu0 0.0
    %658 = vmatpush1.msra.mxu0 0.0
    %659 = vmatprep.subr.mxu0 0.0
    %660 = vmatpush1.msra.mxu0 0.0
    %661 = vmatprep.subr.mxu0 0.0
    %662 = vmatpush1.msra.mxu0 0.0
    %663 = vmatprep.subr.mxu0 0.0
    %664 = vmatpush1.msra.mxu0 0.0
    %665 = vmatprep.subr.mxu0 0.0
    %666 = vmatpush1.msra.mxu0 0.0
    %667 = vmatprep.subr.mxu0 0.0
    %668 = vmatpush1.msra.mxu0 0.0
    %669 = vmatprep.subr.mxu0 0.0
    %670 = vmatpush1.msra.mxu0 0.0
    %671 = vmatprep.subr.mxu0 0.0
    %672 = vmatpush1.msra.mxu0 0.0
    %673 = vmatprep.subr.mxu0 0.0
    %674 = vmatpush1.msra.mxu0 0.0
    %675 = vmatprep.subr.mxu0 0.0
    %676 = vmatpush1.msra.mxu0 0.0
    %677 = vmatprep.subr.mxu0 0.0
    %678 = vmatpush1.msra.mxu0 0.0
    %679 = vmatprep.subr.mxu0 0.0
    %680 = vmatpush1.msra.mxu0 0.0
    %681 = vmatprep.subr.mxu0 0.0
    %682 = vmatpush1.msra.mxu0 0.0
    %683 = vmatprep.subr.mxu0 0.0
    %684 = vmatpush1.msra.mxu0 0.0
    %685 = vmatprep.subr.mxu0 0.0
    %686 = vmatpush1.msra.mxu0 0.0
    %687 = vmatprep.subr.mxu0 0.0
    %688 = vmatpush1.msra.mxu0 0.0
    %689 = vmatprep.subr.mxu0 0.0
    %690 = vmatpush1.msra.mxu0 0.0
    %691 = vmatprep.subr.mxu0 0.0
    %692 = vmatpush1.msra.mxu0 0.0
    %693 = vmatprep.subr.mxu0 0.0
    %694 = vmatpush1.msra.mxu0 0.0
    %695 = vmatprep.subr.mxu0 0.0
    %696 = vmatpush1.msra.mxu0 0.0
    %697 = vmatprep.subr.mxu0 0.0
    %698 = vmatpush1.msra.mxu0 0.0
    %699 = vmatprep.subr.mxu0 0.0
    %700 = vmatpush1.msra.mxu0 0.0
    %701 = vmatprep.subr.mxu0 0.0
    %702 = vmatpush1.msra.mxu0 0.0
    %703 = vmatprep.subr.mxu0 0.0
    %704 = vmatpush1.msra.mxu0 0.0
    %705 = vmatprep.subr.mxu0 0.0
    %706 = vmatpush1.msra.mxu0 0.0
    %707 = vmatprep.subr.mxu0 0.0
    %708 = vmatpush1.msra.mxu0 0.0
    %709 = vmatprep.subr.mxu0 0.0
    %710 = vmatpush1.msra.mxu0 0.0
    %711 = vmatprep.mubr.f32.mxu0 0.0
    %712 = vmatmul.mubr.f32.gmra.mrb[0].mxu0 %v645
    %v713 = vpop.f32.mrb[0].mxu0
    %v714 = vadd.f32 %v643, %v713
    %v715 = vpop.f32.mrb[0].mxu0
    %716 = vdwg.mxu0
    %v717 = vld [vmem:[%s0 + $0x9e] sm:$0xff]
    %v718 = vld [vmem:[%s0 + $0xa6] sm:$0xff]
    %v719 = vld [vmem:[%s0 + $0xae] sm:$0xff]
    %v720 = vld [vmem:[%s0 + $0xb6] sm:$0xff]
    %v721 = vld [vmem:[%s0 + $0xbe] sm:$0x1]
    %v722 = vlaneseq
    %v723 = vshrl.u32 %v722, 7
    %v724 = vsub.s32 0, %v723
    %v725 = vrot.slane %v721, %v724
    %726 = vmatprep.subr.mxu0 0.0
    %727 = vmatpush1.msra.mxu0 %v717
    %728 = vmatprep.subr.mxu0 0.0
    %729 = vmatpush1.msra.mxu0 %v718
    %730 = vmatprep.subr.mxu0 0.0
    %731 = vmatpush1.msra.mxu0 %v719
    %732 = vmatprep.subr.mxu0 0.0
    %733 = vmatpush1.msra.mxu0 %v720
    %734 = vmatprep.subr.mxu0 0.0
    %735 = vmatpush1.msra.mxu0 0.0
    %736 = vmatprep.subr.mxu0 0.0
    %737 = vmatpush1.msra.mxu0 0.0
    %738 = vmatprep.subr.mxu0 0.0
    %739 = vmatpush1.msra.mxu0 0.0
    %740 = vmatprep.subr.mxu0 0.0
    %741 = vmatpush1.msra.mxu0 0.0
    %742 = vmatprep.subr.mxu0 0.0
    %743 = vmatpush1.msra.mxu0 0.0
    %744 = vmatprep.subr.mxu0 0.0
    %745 = vmatpush1.msra.mxu0 0.0
    %746 = vmatprep.subr.mxu0 0.0
    %747 = vmatpush1.msra.mxu0 0.0
    %748 = vmatprep.subr.mxu0 0.0
    %749 = vmatpush1.msra.mxu0 0.0
    %750 = vmatprep.subr.mxu0 0.0
    %751 = vmatpush1.msra.mxu0 0.0
    %752 = vmatprep.subr.mxu0 0.0
    %753 = vmatpush1.msra.mxu0 0.0
    %754 = vmatprep.subr.mxu0 0.0
    %755 = vmatpush1.msra.mxu0 0.0
    %756 = vmatprep.subr.mxu0 0.0
    %757 = vmatpush1.msra.mxu0 0.0
    %758 = vmatprep.subr.mxu0 0.0
    %759 = vmatpush1.msra.mxu0 0.0
    %760 = vmatprep.subr.mxu0 0.0
    %761 = vmatpush1.msra.mxu0 0.0
    %762 = vmatprep.subr.mxu0 0.0
    %763 = vmatpush1.msra.mxu0 0.0
    %764 = vmatprep.subr.mxu0 0.0
    %765 = vmatpush1.msra.mxu0 0.0
    %766 = vmatprep.subr.mxu0 0.0
    %767 = vmatpush1.msra.mxu0 0.0
    %768 = vmatprep.subr.mxu0 0.0
    %769 = vmatpush1.msra.mxu0 0.0
    %770 = vmatprep.subr.mxu0 0.0
    %771 = vmatpush1.msra.mxu0 0.0
    %772 = vmatprep.subr.mxu0 0.0
    %773 = vmatpush1.msra.mxu0 0.0
    %774 = vmatprep.subr.mxu0 0.0
    %775 = vmatpush1.msra.mxu0 0.0
    %776 = vmatprep.subr.mxu0 0.0
    %777 = vmatpush1.msra.mxu0 0.0
    %778 = vmatprep.subr.mxu0 0.0
    %779 = vmatpush1.msra.mxu0 0.0
    %780 = vmatprep.subr.mxu0 0.0
    %781 = vmatpush1.msra.mxu0 0.0
    %782 = vmatprep.subr.mxu0 0.0
    %783 = vmatpush1.msra.mxu0 0.0
    %784 = vmatprep.subr.mxu0 0.0
    %785 = vmatpush1.msra.mxu0 0.0
    %786 = vmatprep.subr.mxu0 0.0
    %787 = vmatpush1.msra.mxu0 0.0
    %788 = vmatprep.subr.mxu0 0.0
    %789 = vmatpush1.msra.mxu0 0.0
    %790 = vmatprep.mubr.f32.mxu0 0.0
    %791 = vmatmul.mubr.f32.gmra.mrb[0].mxu0 %v645
    %v792 = vpop.f32.mrb[0].mxu0
    %v793 = vadd.f32 %v725, %v792
    %v794 = vpop.f32.mrb[0].mxu0
    %795 = vdwg.mxu0
    %v797 = vsel %vm92, %v632, 0
    %v800 = vsel %vm92, %v714, 0
    %802 = vmatprep.subr.mxu0 0.0
    %803 = vmatpush1.xpose.msra.mxu0 %v800
    %804 = vmatprep.subr.mxu0 0.0
    %805 = vmatpush1.xpose.msra.mxu0 0.0
    %806 = vmatprep.subr.mxu0 0.0
    %807 = vmatpush1.xpose.msra.mxu0 0.0
    %808 = vmatprep.subr.mxu0 0.0
    %809 = vmatpush1.xpose.msra.mxu0 0.0
    %810 = vmatprep.subr.mxu0 0.0
    %811 = vmatpush1.xpose.msra.mxu0 0.0
    %812 = vmatprep.subr.mxu0 0.0
    %813 = vmatpush1.xpose.msra.mxu0 0.0
    %814 = vmatprep.subr.mxu0 0.0
    %815 = vmatpush1.xpose.msra.mxu0 0.0
    %816 = vmatprep.subr.mxu0 0.0
    %817 = vmatpush1.xpose.msra.mxu0 0.0
    %818 = vmatprep.subr.mxu0 0.0
    %819 = vmatpush1.xpose.msra.mxu0 0.0
    %820 = vmatprep.subr.mxu0 0.0
    %821 = vmatpush1.xpose.msra.mxu0 0.0
    %822 = vmatprep.subr.mxu0 0.0
    %823 = vmatpush1.xpose.msra.mxu0 0.0
    %824 = vmatprep.subr.mxu0 0.0
    %825 = vmatpush1.xpose.msra.mxu0 0.0
    %826 = vmatprep.subr.mxu0 0.0
    %827 = vmatpush1.xpose.msra.mxu0 0.0
    %828 = vmatprep.subr.mxu0 0.0
    %829 = vmatpush1.xpose.msra.mxu0 0.0
    %830 = vmatprep.subr.mxu0 0.0
    %831 = vmatpush1.xpose.msra.mxu0 0.0
    %832 = vmatprep.subr.mxu0 0.0
    %833 = vmatpush1.xpose.msra.mxu0 0.0
    %834 = vmatprep.subr.mxu0 0.0
    %835 = vmatpush1.xpose.msra.mxu0 0.0
    %836 = vmatprep.subr.mxu0 0.0
    %837 = vmatpush1.xpose.msra.mxu0 0.0
    %838 = vmatprep.subr.mxu0 0.0
    %839 = vmatpush1.xpose.msra.mxu0 0.0
    %840 = vmatprep.subr.mxu0 0.0
    %841 = vmatpush1.xpose.msra.mxu0 0.0
    %842 = vmatprep.subr.mxu0 0.0
    %843 = vmatpush1.xpose.msra.mxu0 0.0
    %844 = vmatprep.subr.mxu0 0.0
    %845 = vmatpush1.xpose.msra.mxu0 0.0
    %846 = vmatprep.subr.mxu0 0.0
    %847 = vmatpush1.xpose.msra.mxu0 0.0
    %848 = vmatprep.subr.mxu0 0.0
    %849 = vmatpush1.xpose.msra.mxu0 0.0
    %850 = vmatprep.subr.mxu0 0.0
    %851 = vmatpush1.xpose.msra.mxu0 0.0
    %852 = vmatprep.subr.mxu0 0.0
    %853 = vmatpush1.xpose.msra.mxu0 0.0
    %854 = vmatprep.subr.mxu0 0.0
    %855 = vmatpush1.xpose.msra.mxu0 0.0
    %856 = vmatprep.subr.mxu0 0.0
    %857 = vmatpush1.xpose.msra.mxu0 0.0
    %858 = vmatprep.subr.mxu0 0.0
    %859 = vmatpush1.xpose.msra.mxu0 0.0
    %860 = vmatprep.subr.mxu0 0.0
    %861 = vmatpush1.xpose.msra.mxu0 0.0
    %862 = vmatprep.subr.mxu0 0.0
    %863 = vmatpush1.xpose.msra.mxu0 0.0
    %864 = vmatprep.subr.mxu0 0.0
    %865 = vmatpush1.xpose.msra.mxu0 0.0
    %866 = vmatprep.mubr.f32.mxu0 0.0
    %867 = vmatmul.mubr.f32.gmra.mrb[0].mxu0 %v797
    %v868 = vpop.f32.mrb[0].mxu0
    %v869 = vadd.f32 0.0, %v868
    %v870 = vpop.f32.mrb[0].mxu0
    %871 = vdwg.mxu0
    %v872 = vsel %vm92, %v869, -inf
    %873 = vmax.xlane.f32.xlu0 %v872
    %v874 = vpop.xlane.xlu0 %873
    %v875 = vsub.f32 %v869, %v874
    %v876 = vmul.f32 %v875, 1.442695
    %v877 = vpow.pop %v876
    %v878 = vsel %vm92, %v877, 0.0
    %879 = vadd.xlane.f32.xlu0 %v878
    %v880 = vpop.xlane.xlu0 %879
    %v881 = vrcp.pop %v880
    %v882 = vmul.f32 %v877, %v881
    %v884 = vsel %vm92, %v882, 0
    %886 = vmatprep.subr.mxu0 0.0
    %887 = vmatpush1.msra.mxu0 %v793
    %888 = vmatprep.subr.mxu0 0.0
    %889 = vmatpush1.msra.mxu0 0.0
    %890 = vmatprep.subr.mxu0 0.0
    %891 = vmatpush1.msra.mxu0 0.0
    %892 = vmatprep.subr.mxu0 0.0
    %893 = vmatpush1.msra.mxu0 0.0
    %894 = vmatprep.subr.mxu0 0.0
    %895 = vmatpush1.msra.mxu0 0.0
    %896 = vmatprep.subr.mxu0 0.0
    %897 = vmatpush1.msra.mxu0 0.0
    %898 = vmatprep.subr.mxu0 0.0
    %899 = vmatpush1.msra.mxu0 0.0
    %900 = vmatprep.subr.mxu0 0.0
    %901 = vmatpush1.msra.mxu0 0.0
    %902 = vmatprep.subr.mxu0 0.0
    %903 = vmatpush1.msra.mxu0 0.0
    %904 = vmatprep.subr.mxu0 0.0
    %905 = vmatpush1.msra.mxu0 0.0
    %906 = vmatprep.subr.mxu0 0.0
    %907 = vmatpush1.msra.mxu0 0.0
    %908 = vmatprep.subr.mxu0 0.0
    %909 = vmatpush1.msra.mxu0 0.0
    %910 = vmatprep.subr.mxu0 0.0
    %911 = vmatpush1.msra.mxu0 0.0
    %912 = vmatprep.subr.mxu0 0.0
    %913 = vmatpush1.msra.mxu0 0.0
    %914 = vmatprep.subr.mxu0 0.0
    %915 = vmatpush1.msra.mxu0 0.0
    %916 = vmatprep.subr.mxu0 0.0
    %917 = vmatpush1.msra.mxu0 0.0
    %918 = vmatprep.subr.mxu0 0.0
    %919 = vmatpush1.msra.mxu0 0.0
    %920 = vmatprep.subr.mxu0 0.0
    %921 = vmatpush1.msra.mxu0 0.0
    %922 = vmatprep.subr.mxu0 0.0
    %923 = vmatpush1.msra.mxu0 0.0
    %924 = vmatprep.subr.mxu0 0.0
    %925 = vmatpush1.msra.mxu0 0.0
    %926 = vmatprep.subr.mxu0 0.0
    %927 = vmatpush1.msra.mxu0 0.0
    %928 = vmatprep.subr.mxu0 0.0
    %929 = vmatpush1.msra.mxu0 0.0
    %930 = vmatprep.subr.mxu0 0.0
    %931 = vmatpush1.msra.mxu0 0.0
    %932 = vmatprep.subr.mxu0 0.0
    %933 = vmatpush1.msra.mxu0 0.0
    %934 = vmatprep.subr.mxu0 0.0
    %935 = vmatpush1.msra.mxu0 0.0
    %936 = vmatprep.subr.mxu0 0.0
    %937 = vmatpush1.msra.mxu0 0.0
    %938 = vmatprep.subr.mxu0 0.0
    %939 = vmatpush1.msra.mxu0 0.0
    %940 = vmatprep.subr.mxu0 0.0
    %941 = vmatpush1.msra.mxu0 0.0
    %942 = vmatprep.subr.mxu0 0.0
    %943 = vmatpush1.msra.mxu0 0.0
    %944 = vmatprep.subr.mxu0 0.0
    %945 = vmatpush1.msra.mxu0 0.0
    %946 = vmatprep.subr.mxu0 0.0
    %947 = vmatpush1.msra.mxu0 0.0
    %948 = vmatprep.subr.mxu0 0.0
    %949 = vmatpush1.msra.mxu0 0.0
    %950 = vmatprep.mubr.f32.mxu0 0.0
    %951 = vmatmul.mubr.f32.gmra.mrb[0].mxu0 %v884
    %v952 = vpop.f32.mrb[0].mxu0
    %v953 = vadd.f32 0.0, %v952
    %v954 = vpop.f32.mrb[0].mxu0
    %955 = vdwg.mxu0
    %v956 = vsel %vm92, %v882, 0.0
    %v957 = vrot.slane %v956, 4
    %v958 = vadd.f32 %v956, %v957
    %v959 = vrot.slane %v958, 2
    %v960 = vadd.f32 %v958, %v959
    %v961 = vrot.slane %v960, 1
    %v962 = vadd.f32 %v960, %v961
    %963 = vrot.lane.b32.xlu0 %v632, 120
    %v964 = vpop.permute.xlu0 %963
    %965 = vrot.lane.b32.xlu0 %v714, 120
    %v966 = vpop.permute.xlu0 %965
    %v967 = vsel %vm92, %v964, 0
    %v969 = vsel %vm92, %v966, 0
    %971 = vmatprep.subr.mxu0 0.0
    %972 = vmatpush1.xpose.msra.mxu0 %v969
    %973 = vmatprep.subr.mxu0 0.0
    %974 = vmatpush1.xpose.msra.mxu0 0.0
    %975 = vmatprep.subr.mxu0 0.0
    %976 = vmatpush1.xpose.msra.mxu0 0.0
    %977 = vmatprep.subr.mxu0 0.0
    %978 = vmatpush1.xpose.msra.mxu0 0.0
    %979 = vmatprep.subr.mxu0 0.0
    %980 = vmatpush1.xpose.msra.mxu0 0.0
    %981 = vmatprep.subr.mxu0 0.0
    %982 = vmatpush1.xpose.msra.mxu0 0.0
    %983 = vmatprep.subr.mxu0 0.0
    %984 = vmatpush1.xpose.msra.mxu0 0.0
    %985 = vmatprep.subr.mxu0 0.0
    %986 = vmatpush1.xpose.msra.mxu0 0.0
    %987 = vmatprep.subr.mxu0 0.0
    %988 = vmatpush1.xpose.msra.mxu0 0.0
    %989 = vmatprep.subr.mxu0 0.0
    %990 = vmatpush1.xpose.msra.mxu0 0.0
    %991 = vmatprep.subr.mxu0 0.0
    %992 = vmatpush1.xpose.msra.mxu0 0.0
    %993 = vmatprep.subr.mxu0 0.0
    %994 = vmatpush1.xpose.msra.mxu0 0.0
    %995 = vmatprep.subr.mxu0 0.0
    %996 = vmatpush1.xpose.msra.mxu0 0.0
    %997 = vmatprep.subr.mxu0 0.0
    %998 = vmatpush1.xpose.msra.mxu0 0.0
    %999 = vmatprep.subr.mxu0 0.0
    %1000 = vmatpush1.xpose.msra.mxu0 0.0
    %1001 = vmatprep.subr.mxu0 0.0
    %1002 = vmatpush1.xpose.msra.mxu0 0.0
    %1003 = vmatprep.subr.mxu0 0.0
    %1004 = vmatpush1.xpose.msra.mxu0 0.0
    %1005 = vmatprep.subr.mxu0 0.0
    %1006 = vmatpush1.xpose.msra.mxu0 0.0
    %1007 = vmatprep.subr.mxu0 0.0
    %1008 = vmatpush1.xpose.msra.mxu0 0.0
    %1009 = vmatprep.subr.mxu0 0.0
    %1010 = vmatpush1.xpose.msra.mxu0 0.0
    %1011 = vmatprep.subr.mxu0 0.0
    %1012 = vmatpush1.xpose.msra.mxu0 0.0
    %1013 = vmatprep.subr.mxu0 0.0
    %1014 = vmatpush1.xpose.msra.mxu0 0.0
    %1015 = vmatprep.subr.mxu0 0.0
    %1016 = vmatpush1.xpose.msra.mxu0 0.0
    %1017 = vmatprep.subr.mxu0 0.0
    %1018 = vmatpush1.xpose.msra.mxu0 0.0
    %1019 = vmatprep.subr.mxu0 0.0
    %1020 = vmatpush1.xpose.msra.mxu0 0.0
    %1021 = vmatprep.subr.mxu0 0.0
    %1022 = vmatpush1.xpose.msra.mxu0 0.0
    %1023 = vmatprep.subr.mxu0 0.0
    %1024 = vmatpush1.xpose.msra.mxu0 0.0
    %1025 = vmatprep.subr.mxu0 0.0
    %1026 = vmatpush1.xpose.msra.mxu0 0.0
    %1027 = vmatprep.subr.mxu0 0.0
    %1028 = vmatpush1.xpose.msra.mxu0 0.0
    %1029 = vmatprep.subr.mxu0 0.0
    %1030 = vmatpush1.xpose.msra.mxu0 0.0
    %1031 = vmatprep.subr.mxu0 0.0
    %1032 = vmatpush1.xpose.msra.mxu0 0.0
    %1033 = vmatprep.subr.mxu0 0.0
    %1034 = vmatpush1.xpose.msra.mxu0 0.0
    %1035 = vmatprep.mubr.f32.mxu0 0.0
    %1036 = vmatmul.mubr.f32.gmra.mrb[0].mxu0 %v967
    %v1037 = vpop.f32.mrb[0].mxu0
    %v1038 = vadd.f32 0.0, %v1037
    %v1039 = vpop.f32.mrb[0].mxu0
    %1040 = vdwg.mxu0
    %v1041 = vsel %vm92, %v1038, -inf
    %1042 = vmax.xlane.f32.xlu0 %v1041
    %v1043 = vpop.xlane.xlu0 %1042
    %v1044 = vsub.f32 %v1038, %v1043
    %v1045 = vmul.f32 %v1044, 1.442695
    %v1046 = vpow.pop %v1045
    %v1047 = vsel %vm92, %v1046, 0.0
    %1048 = vadd.xlane.f32.xlu0 %v1047
    %v1049 = vpop.xlane.xlu0 %1048
    %v1050 = vrcp.pop %v1049
    %v1051 = vmul.f32 %v1046, %v1050
    %1053 = vrot.lane.b32.xlu0 %v793, 120
    %v1054 = vpop.permute.xlu0 %1053
    %v1057 = vsel %vm92, %v1051, 0
    %1059 = vmatprep.subr.mxu0 0.0
    %1060 = vmatpush1.msra.mxu0 %v1054
    %1061 = vmatprep.subr.mxu0 0.0
    %1062 = vmatpush1.msra.mxu0 0.0
    %1063 = vmatprep.subr.mxu0 0.0
    %1064 = vmatpush1.msra.mxu0 0.0
    %1065 = vmatprep.subr.mxu0 0.0
    %1066 = vmatpush1.msra.mxu0 0.0
    %1067 = vmatprep.subr.mxu0 0.0
    %1068 = vmatpush1.msra.mxu0 0.0
    %1069 = vmatprep.subr.mxu0 0.0
    %1070 = vmatpush1.msra.mxu0 0.0
    %1071 = vmatprep.subr.mxu0 0.0
    %1072 = vmatpush1.msra.mxu0 0.0
    %1073 = vmatprep.subr.mxu0 0.0
    %1074 = vmatpush1.msra.mxu0 0.0
    %1075 = vmatprep.subr.mxu0 0.0
    %1076 = vmatpush1.msra.mxu0 0.0
    %1077 = vmatprep.subr.mxu0 0.0
    %1078 = vmatpush1.msra.mxu0 0.0
    %1079 = vmatprep.subr.mxu0 0.0
    %1080 = vmatpush1.msra.mxu0 0.0
    %1081 = vmatprep.subr.mxu0 0.0
    %1082 = vmatpush1.msra.mxu0 0.0
    %1083 = vmatprep.subr.mxu0 0.0
    %1084 = vmatpush1.msra.mxu0 0.0
    %1085 = vmatprep.subr.mxu0 0.0
    %1086 = vmatpush1.msra.mxu0 0.0
    %1087 = vmatprep.subr.mxu0 0.0
    %1088 = vmatpush1.msra.mxu0 0.0
    %1089 = vmatprep.subr.mxu0 0.0
    %1090 = vmatpush1.msra.mxu0 0.0
    %1091 = vmatprep.subr.mxu0 0.0
    %1092 = vmatpush1.msra.mxu0 0.0
    %1093 = vmatprep.subr.mxu0 0.0
    %1094 = vmatpush1.msra.mxu0 0.0
    %1095 = vmatprep.subr.mxu0 0.0
    %1096 = vmatpush1.msra.mxu0 0.0
    %1097 = vmatprep.subr.mxu0 0.0
    %1098 = vmatpush1.msra.mxu0 0.0
    %1099 = vmatprep.subr.mxu0 0.0
    %1100 = vmatpush1.msra.mxu0 0.0
    %1101 = vmatprep.subr.mxu0 0.0
    %1102 = vmatpush1.msra.mxu0 0.0
    %1103 = vmatprep.subr.mxu0 0.0
    %1104 = vmatpush1.msra.mxu0 0.0
    %1105 = vmatprep.subr.mxu0 0.0
    %1106 = vmatpush1.msra.mxu0 0.0
    %1107 = vmatprep.subr.mxu0 0.0
    %1108 = vmatpush1.msra.mxu0 0.0
    %1109 = vmatprep.subr.mxu0 0.0
    %1110 = vmatpush1.msra.mxu0 0.0
    %1111 = vmatprep.subr.mxu0 0.0
    %1112 = vmatpush1.msra.mxu0 0.0
    %1113 = vmatprep.subr.mxu0 0.0
    %1114 = vmatpush1.msra.mxu0 0.0
    %1115 = vmatprep.subr.mxu0 0.0
    %1116 = vmatpush1.msra.mxu0 0.0
    %1117 = vmatprep.subr.mxu0 0.0
    %1118 = vmatpush1.msra.mxu0 0.0
    %1119 = vmatprep.subr.mxu0 0.0
    %1120 = vmatpush1.msra.mxu0 0.0
    %1121 = vmatprep.subr.mxu0 0.0
    %1122 = vmatpush1.msra.mxu0 0.0
    %1123 = vmatprep.mubr.f32.mxu0 0.0
    %1124 = vmatmul.mubr.f32.gmra.mrb[0].mxu0 %v1057
    %v1125 = vpop.f32.mrb[0].mxu0
    %v1126 = vadd.f32 0.0, %v1125
    %v1127 = vpop.f32.mrb[0].mxu0
    %1128 = vdwg.mxu0
    %v1129 = vsel %vm92, %v1051, 0.0
    %v1130 = vrot.slane %v1129, 4
    %v1131 = vadd.f32 %v1129, %v1130
    %v1132 = vrot.slane %v1131, 2
    %v1133 = vadd.f32 %v1131, %v1132
    %v1134 = vrot.slane %v1133, 1
    %v1135 = vadd.f32 %v1133, %v1134
    %v1136 = vadd.f32 %v962, %v1135
    %1137 = vrot.lane.b32.xlu0 %v632, 112
    %v1138 = vpop.permute.xlu0 %1137
    %1139 = vrot.lane.b32.xlu0 %v714, 112
    %v1140 = vpop.permute.xlu0 %1139
    %v1141 = vsel %vm92, %v1138, 0
    %v1143 = vsel %vm92, %v1140, 0
    %1145 = vmatprep.subr.mxu0 0.0
    %1146 = vmatpush1.xpose.msra.mxu0 %v1143
    %1147 = vmatprep.subr.mxu0 0.0
    %1148 = vmatpush1.xpose.msra.mxu0 0.0
    %1149 = vmatprep.subr.mxu0 0.0
    %1150 = vmatpush1.xpose.msra.mxu0 0.0
    %1151 = vmatprep.subr.mxu0 0.0
    %1152 = vmatpush1.xpose.msra.mxu0 0.0
    %1153 = vmatprep.subr.mxu0 0.0
    %1154 = vmatpush1.xpose.msra.mxu0 0.0
    %1155 = vmatprep.subr.mxu0 0.0
    %1156 = vmatpush1.xpose.msra.mxu0 0.0
    %1157 = vmatprep.subr.mxu0 0.0
    %1158 = vmatpush1.xpose.msra.mxu0 0.0
    %1159 = vmatprep.subr.mxu0 0.0
    %1160 = vmatpush1.xpose.msra.mxu0 0.0
    %1161 = vmatprep.subr.mxu0 0.0
    %1162 = vmatpush1.xpose.msra.mxu0 0.0
    %1163 = vmatprep.subr.mxu0 0.0
    %1164 = vmatpush1.xpose.msra.mxu0 0.0
    %1165 = vmatprep.subr.mxu0 0.0
    %1166 = vmatpush1.xpose.msra.mxu0 0.0
    %1167 = vmatprep.subr.mxu0 0.0
    %1168 = vmatpush1.xpose.msra.mxu0 0.0
    %1169 = vmatprep.subr.mxu0 0.0
    %1170 = vmatpush1.xpose.msra.mxu0 0.0
    %1171 = vmatprep.subr.mxu0 0.0
    %1172 = vmatpush1.xpose.msra.mxu0 0.0
    %1173 = vmatprep.subr.mxu0 0.0
    %1174 = vmatpush1.xpose.msra.mxu0 0.0
    %1175 = vmatprep.subr.mxu0 0.0
    %1176 = vmatpush1.xpose.msra.mxu0 0.0
    %1177 = vmatprep.subr.mxu0 0.0
    %1178 = vmatpush1.xpose.msra.mxu0 0.0
    %1179 = vmatprep.subr.mxu0 0.0
    %1180 = vmatpush1.xpose.msra.mxu0 0.0
    %1181 = vmatprep.subr.mxu0 0.0
    %1182 = vmatpush1.xpose.msra.mxu0 0.0
    %1183 = vmatprep.subr.mxu0 0.0
    %1184 = vmatpush1.xpose.msra.mxu0 0.0
    %1185 = vmatprep.subr.mxu0 0.0
    %1186 = vmatpush1.xpose.msra.mxu0 0.0
    %1187 = vmatprep.subr.mxu0 0.0
    %1188 = vmatpush1.xpose.msra.mxu0 0.0
    %1189 = vmatprep.subr.mxu0 0.0
    %1190 = vmatpush1.xpose.msra.mxu0 0.0
    %1191 = vmatprep.subr.mxu0 0.0
    %1192 = vmatpush1.xpose.msra.mxu0 0.0
    %1193 = vmatprep.subr.mxu0 0.0
    %1194 = vmatpush1.xpose.msra.mxu0 0.0
    %1195 = vmatprep.subr.mxu0 0.0
    %1196 = vmatpush1.xpose.msra.mxu0 0.0
    %1197 = vmatprep.subr.mxu0 0.0
    %1198 = vmatpush1.xpose.msra.mxu0 0.0
    %1199 = vmatprep.subr.mxu0 0.0
    %1200 = vmatpush1.xpose.msra.mxu0 0.0
    %1201 = vmatprep.subr.mxu0 0.0
    %1202 = vmatpush1.xpose.msra.mxu0 0.0
    %1203 = vmatprep.subr.mxu0 0.0
    %1204 = vmatpush1.xpose.msra.mxu0 0.0
    %1205 = vmatprep.subr.mxu0 0.0
    %1206 = vmatpush1.xpose.msra.mxu0 0.0
    %1207 = vmatprep.subr.mxu0 0.0
    %1208 = vmatpush1.xpose.msra.mxu0 0.0
    %1209 = vmatprep.mubr.f32.mxu0 0.0
    %1210 = vmatmul.mubr.f32.gmra.mrb[0].mxu0 %v1141
    %v1211 = vpop.f32.mrb[0].mxu0
    %v1212 = vadd.f32 0.0, %v1211
    %v1213 = vpop.f32.mrb[0].mxu0
    %1214 = vdwg.mxu0
    %v1215 = vsel %vm92, %v1212, -inf
    %1216 = vmax.xlane.f32.xlu0 %v1215
    %v1217 = vpop.xlane.xlu0 %1216
    %v1218 = vsub.f32 %v1212, %v1217
    %v1219 = vmul.f32 %v1218, 1.442695
    %v1220 = vpow.pop %v1219
    %v1221 = vsel %vm92, %v1220, 0.0
    %1222 = vadd.xlane.f32.xlu0 %v1221
    %v1223 = vpop.xlane.xlu0 %1222
    %v1224 = vrcp.pop %v1223
    %v1225 = vmul.f32 %v1220, %v1224
    %1226 = vrot.lane.b32.xlu0 %v793, 112
    %v1227 = vpop.permute.xlu0 %1226
    %v1230 = vsel %vm92, %v1225, 0
    %1232 = vmatprep.subr.mxu0 0.0
    %1233 = vmatpush1.msra.mxu0 %v1227
    %1234 = vmatprep.subr.mxu0 0.0
    %1235 = vmatpush1.msra.mxu0 0.0
    %1236 = vmatprep.subr.mxu0 0.0
    %1237 = vmatpush1.msra.mxu0 0.0
    %1238 = vmatprep.subr.mxu0 0.0
    %1239 = vmatpush1.msra.mxu0 0.0
    %1240 = vmatprep.subr.mxu0 0.0
    %1241 = vmatpush1.msra.mxu0 0.0
    %1242 = vmatprep.subr.mxu0 0.0
    %1243 = vmatpush1.msra.mxu0 0.0
    %1244 = vmatprep.subr.mxu0 0.0
    %1245 = vmatpush1.msra.mxu0 0.0
    %1246 = vmatprep.subr.mxu0 0.0
    %1247 = vmatpush1.msra.mxu0 0.0
    %1248 = vmatprep.subr.mxu0 0.0
    %1249 = vmatpush1.msra.mxu0 0.0
    %1250 = vmatprep.subr.mxu0 0.0
    %1251 = vmatpush1.msra.mxu0 0.0
    %1252 = vmatprep.subr.mxu0 0.0
    %1253 = vmatpush1.msra.mxu0 0.0
    %1254 = vmatprep.subr.mxu0 0.0
    %1255 = vmatpush1.msra.mxu0 0.0
    %1256 = vmatprep.subr.mxu0 0.0
    %1257 = vmatpush1.msra.mxu0 0.0
    %1258 = vmatprep.subr.mxu0 0.0
    %1259 = vmatpush1.msra.mxu0 0.0
    %1260 = vmatprep.subr.mxu0 0.0
    %1261 = vmatpush1.msra.mxu0 0.0
    %1262 = vmatprep.subr.mxu0 0.0
    %1263 = vmatpush1.msra.mxu0 0.0
    %1264 = vmatprep.subr.mxu0 0.0
    %1265 = vmatpush1.msra.mxu0 0.0
    %1266 = vmatprep.subr.mxu0 0.0
    %1267 = vmatpush1.msra.mxu0 0.0
    %1268 = vmatprep.subr.mxu0 0.0
    %1269 = vmatpush1.msra.mxu0 0.0
    %1270 = vmatprep.subr.mxu0 0.0
    %1271 = vmatpush1.msra.mxu0 0.0
    %1272 = vmatprep.subr.mxu0 0.0
    %1273 = vmatpush1.msra.mxu0 0.0
    %1274 = vmatprep.subr.mxu0 0.0
    %1275 = vmatpush1.msra.mxu0 0.0
    %1276 = vmatprep.subr.mxu0 0.0
    %1277 = vmatpush1.msra.mxu0 0.0
    %1278 = vmatprep.subr.mxu0 0.0
    %1279 = vmatpush1.msra.mxu0 0.0
    %1280 = vmatprep.subr.mxu0 0.0
    %1281 = vmatpush1.msra.mxu0 0.0
    %1282 = vmatprep.subr.mxu0 0.0
    %1283 = vmatpush1.msra.mxu0 0.0
    %1284 = vmatprep.subr.mxu0 0.0
    %1285 = vmatpush1.msra.mxu0 0.0
    %1286 = vmatprep.subr.mxu0 0.0
    %1287 = vmatpush1.msra.mxu0 0.0
    %1288 = vmatprep.subr.mxu0 0.0
    %1289 = vmatpush1.msra.mxu0 0.0
    %1290 = vmatprep.subr.mxu0 0.0
    %1291 = vmatpush1.msra.mxu0 0.0
    %1292 = vmatprep.subr.mxu0 0.0
    %1293 = vmatpush1.msra.mxu0 0.0
    %1294 = vmatprep.subr.mxu0 0.0
    %1295 = vmatpush1.msra.mxu0 0.0
    %1296 = vmatprep.mubr.f32.mxu0 0.0
    %1297 = vmatmul.mubr.f32.gmra.mrb[0].mxu0 %v1230
    %v1298 = vpop.f32.mrb[0].mxu0
    %v1299 = vadd.f32 0.0, %v1298
    %v1300 = vpop.f32.mrb[0].mxu0
    %1301 = vdwg.mxu0
    %v1302 = vsel %vm92, %v1225, 0.0
    %v1303 = vrot.slane %v1302, 4
    %v1304 = vadd.f32 %v1302, %v1303
    %v1305 = vrot.slane %v1304, 2
    %v1306 = vadd.f32 %v1304, %v1305
    %v1307 = vrot.slane %v1306, 1
    %v1308 = vadd.f32 %v1306, %v1307
    %v1309 = vadd.f32 %v1136, %v1308
    %1310 = vrot.lane.b32.xlu0 %v632, 104
    %v1311 = vpop.permute.xlu0 %1310
    %1312 = vrot.lane.b32.xlu0 %v714, 104
    %v1313 = vpop.permute.xlu0 %1312
    %v1314 = vsel %vm92, %v1311, 0
    %v1316 = vsel %vm92, %v1313, 0
    %1318 = vmatprep.subr.mxu0 0.0
    %1319 = vmatpush1.xpose.msra.mxu0 %v1316
    %1320 = vmatprep.subr.mxu0 0.0
    %1321 = vmatpush1.xpose.msra.mxu0 0.0
    %1322 = vmatprep.subr.mxu0 0.0
    %1323 = vmatpush1.xpose.msra.mxu0 0.0
    %1324 = vmatprep.subr.mxu0 0.0
    %1325 = vmatpush1.xpose.msra.mxu0 0.0
    %1326 = vmatprep.subr.mxu0 0.0
    %1327 = vmatpush1.xpose.msra.mxu0 0.0
    %1328 = vmatprep.subr.mxu0 0.0
    %1329 = vmatpush1.xpose.msra.mxu0 0.0
    %1330 = vmatprep.subr.mxu0 0.0
    %1331 = vmatpush1.xpose.msra.mxu0 0.0
    %1332 = vmatprep.subr.mxu0 0.0
    %1333 = vmatpush1.xpose.msra.mxu0 0.0
    %1334 = vmatprep.subr.mxu0 0.0
    %1335 = vmatpush1.xpose.msra.mxu0 0.0
    %1336 = vmatprep.subr.mxu0 0.0
    %1337 = vmatpush1.xpose.msra.mxu0 0.0
    %1338 = vmatprep.subr.mxu0 0.0
    %1339 = vmatpush1.xpose.msra.mxu0 0.0
    %1340 = vmatprep.subr.mxu0 0.0
    %1341 = vmatpush1.xpose.msra.mxu0 0.0
    %1342 = vmatprep.subr.mxu0 0.0
    %1343 = vmatpush1.xpose.msra.mxu0 0.0
    %1344 = vmatprep.subr.mxu0 0.0
    %1345 = vmatpush1.xpose.msra.mxu0 0.0
    %1346 = vmatprep.subr.mxu0 0.0
    %1347 = vmatpush1.xpose.msra.mxu0 0.0
    %1348 = vmatprep.subr.mxu0 0.0
    %1349 = vmatpush1.xpose.msra.mxu0 0.0
    %1350 = vmatprep.subr.mxu0 0.0
    %1351 = vmatpush1.xpose.msra.mxu0 0.0
    %1352 = vmatprep.subr.mxu0 0.0
    %1353 = vmatpush1.xpose.msra.mxu0 0.0
    %1354 = vmatprep.subr.mxu0 0.0
    %1355 = vmatpush1.xpose.msra.mxu0 0.0
    %1356 = vmatprep.subr.mxu0 0.0
    %1357 = vmatpush1.xpose.msra.mxu0 0.0
    %1358 = vmatprep.subr.mxu0 0.0
    %1359 = vmatpush1.xpose.msra.mxu0 0.0
    %1360 = vmatprep.subr.mxu0 0.0
    %1361 = vmatpush1.xpose.msra.mxu0 0.0
    %1362 = vmatprep.subr.mxu0 0.0
    %1363 = vmatpush1.xpose.msra.mxu0 0.0
    %1364 = vmatprep.subr.mxu0 0.0
    %1365 = vmatpush1.xpose.msra.mxu0 0.0
    %1366 = vmatprep.subr.mxu0 0.0
    %1367 = vmatpush1.xpose.msra.mxu0 0.0
    %1368 = vmatprep.subr.mxu0 0.0
    %1369 = vmatpush1.xpose.msra.mxu0 0.0
    %1370 = vmatprep.subr.mxu0 0.0
    %1371 = vmatpush1.xpose.msra.mxu0 0.0
    %1372 = vmatprep.subr.mxu0 0.0
    %1373 = vmatpush1.xpose.msra.mxu0 0.0
    %1374 = vmatprep.subr.mxu0 0.0
    %1375 = vmatpush1.xpose.msra.mxu0 0.0
    %1376 = vmatprep.subr.mxu0 0.0
    %1377 = vmatpush1.xpose.msra.mxu0 0.0
    %1378 = vmatprep.subr.mxu0 0.0
    %1379 = vmatpush1.xpose.msra.mxu0 0.0
    %1380 = vmatprep.subr.mxu0 0.0
    %1381 = vmatpush1.xpose.msra.mxu0 0.0
    %1382 = vmatprep.mubr.f32.mxu0 0.0
    %1383 = vmatmul.mubr.f32.gmra.mrb[0].mxu0 %v1314
    %v1384 = vpop.f32.mrb[0].mxu0
    %v1385 = vadd.f32 0.0, %v1384
    %v1386 = vpop.f32.mrb[0].mxu0
    %1387 = vdwg.mxu0
    %v1388 = vsel %vm92, %v1385, -inf
    %1389 = vmax.xlane.f32.xlu0 %v1388
    %v1390 = vpop.xlane.xlu0 %1389
    %v1391 = vsub.f32 %v1385, %v1390
    %v1392 = vmul.f32 %v1391, 1.442695
    %v1393 = vpow.pop %v1392
    %v1394 = vsel %vm92, %v1393, 0.0
    %1395 = vadd.xlane.f32.xlu0 %v1394
    %v1396 = vpop.xlane.xlu0 %1395
    %v1397 = vrcp.pop %v1396
    %v1398 = vmul.f32 %v1393, %v1397
    %1399 = vrot.lane.b32.xlu0 %v793, 104
    %v1400 = vpop.permute.xlu0 %1399
    %v1403 = vsel %vm92, %v1398, 0
    %1405 = vmatprep.subr.mxu0 0.0
    %1406 = vmatpush1.msra.mxu0 %v1400
    %1407 = vmatprep.subr.mxu0 0.0
    %1408 = vmatpush1.msra.mxu0 0.0
    %1409 = vmatprep.subr.mxu0 0.0
    %1410 = vmatpush1.msra.mxu0 0.0
    %1411 = vmatprep.subr.mxu0 0.0
    %1412 = vmatpush1.msra.mxu0 0.0
    %1413 = vmatprep.subr.mxu0 0.0
    %1414 = vmatpush1.msra.mxu0 0.0
    %1415 = vmatprep.subr.mxu0 0.0
    %1416 = vmatpush1.msra.mxu0 0.0
    %1417 = vmatprep.subr.mxu0 0.0
    %1418 = vmatpush1.msra.mxu0 0.0
    %1419 = vmatprep.subr.mxu0 0.0
    %1420 = vmatpush1.msra.mxu0 0.0
    %1421 = vmatprep.subr.mxu0 0.0
    %1422 = vmatpush1.msra.mxu0 0.0
    %1423 = vmatprep.subr.mxu0 0.0
    %1424 = vmatpush1.msra.mxu0 0.0
    %1425 = vmatprep.subr.mxu0 0.0
    %1426 = vmatpush1.msra.mxu0 0.0
    %1427 = vmatprep.subr.mxu0 0.0
    %1428 = vmatpush1.msra.mxu0 0.0
    %1429 = vmatprep.subr.mxu0 0.0
    %1430 = vmatpush1.msra.mxu0 0.0
    %1431 = vmatprep.subr.mxu0 0.0
    %1432 = vmatpush1.msra.mxu0 0.0
    %1433 = vmatprep.subr.mxu0 0.0
    %1434 = vmatpush1.msra.mxu0 0.0
    %1435 = vmatprep.subr.mxu0 0.0
    %1436 = vmatpush1.msra.mxu0 0.0
    %1437 = vmatprep.subr.mxu0 0.0
    %1438 = vmatpush1.msra.mxu0 0.0
    %1439 = vmatprep.subr.mxu0 0.0
    %1440 = vmatpush1.msra.mxu0 0.0
    %1441 = vmatprep.subr.mxu0 0.0
    %1442 = vmatpush1.msra.mxu0 0.0
    %1443 = vmatprep.subr.mxu0 0.0
    %1444 = vmatpush1.msra.mxu0 0.0
    %1445 = vmatprep.subr.mxu0 0.0
    %1446 = vmatpush1.msra.mxu0 0.0
    %1447 = vmatprep.subr.mxu0 0.0
    %1448 = vmatpush1.msra.mxu0 0.0
    %1449 = vmatprep.subr.mxu0 0.0
    %1450 = vmatpush1.msra.mxu0 0.0
    %1451 = vmatprep.subr.mxu0 0.0
    %1452 = vmatpush1.msra.mxu0 0.0
    %1453 = vmatprep.subr.mxu0 0.0
    %1454 = vmatpush1.msra.mxu0 0.0
    %1455 = vmatprep.subr.mxu0 0.0
    %1456 = vmatpush1.msra.mxu0 0.0
    %1457 = vmatprep.subr.mxu0 0.0
    %1458 = vmatpush1.msra.mxu0 0.0
    %1459 = vmatprep.subr.mxu0 0.0
    %1460 = vmatpush1.msra.mxu0 0.0
    %1461 = vmatprep.subr.mxu0 0.0
    %1462 = vmatpush1.msra.mxu0 0.0
    %1463 = vmatprep.subr.mxu0 0.0
    %1464 = vmatpush1.msra.mxu0 0.0
    %1465 = vmatprep.subr.mxu0 0.0
    %1466 = vmatpush1.msra.mxu0 0.0
    %1467 = vmatprep.subr.mxu0 0.0
    %1468 = vmatpush1.msra.mxu0 0.0
    %1469 = vmatprep.mubr.f32.mxu0 0.0
    %1470 = vmatmul.mubr.f32.gmra.mrb[0].mxu0 %v1403
    %v1471 = vpop.f32.mrb[0].mxu0
    %v1472 = vadd.f32 0.0, %v1471
    %v1473 = vpop.f32.mrb[0].mxu0
    %1474 = vdwg.mxu0
    %v1475 = vsel %vm92, %v1398, 0.0
    %v1476 = vrot.slane %v1475, 4
    %v1477 = vadd.f32 %v1475, %v1476
    %v1478 = vrot.slane %v1477, 2
    %v1479 = vadd.f32 %v1477, %v1478
    %v1480 = vrot.slane %v1479, 1
    %v1481 = vadd.f32 %v1479, %v1480
    %v1482 = vadd.f32 %v1309, %v1481
    %1484 = vrot.lane.b32.xlu0 %v1126, 8
    %v1485 = vpop.permute.xlu0 %1484
    %1488 = vrot.lane.b32.xlu0 %v1299, 16
    %v1489 = vpop.permute.xlu0 %1488
    %1492 = vrot.lane.b32.xlu0 %v1472, 24
    %v1493 = vpop.permute.xlu0 %1492
    %v1495 = vsel %vm92, %v953, %v1485
    %v1496 = vsel %vm13, %v1495, %v1489
    %vm1497 = vcmask 195584
    %v1498 = vsel %vm1497, %v1496, %v1493
    %v1499 = vld [vmem:[%s0 + $0xbf] sm:$0xff]
    %v1500 = vld [vmem:[%s0 + $0xc7] sm:$0xff]
    %v1501 = vld [vmem:[%s0 + $0xcf] sm:$0xff]
    %v1502 = vld [vmem:[%s0 + $0xd7] sm:$0xff]
    %v1503 = vld [vmem:[%s0 + $0xdf] sm:$0x1]
    %v1504 = vlaneseq
    %v1505 = vshrl.u32 %v1504, 7
    %v1506 = vsub.s32 0, %v1505
    %v1507 = vrot.slane %v1503, %v1506
    %v1509 = vsel %vm561, %v1498, 0
    %1511 = vmatprep.subr.mxu0 0.0
    %1512 = vmatpush1.msra.mxu0 %v1499
    %1513 = vmatprep.subr.mxu0 0.0
    %1514 = vmatpush1.msra.mxu0 %v1500
    %1515 = vmatprep.subr.mxu0 0.0
    %1516 = vmatpush1.msra.mxu0 %v1501
    %1517 = vmatprep.subr.mxu0 0.0
    %1518 = vmatpush1.msra.mxu0 %v1502
    %1519 = vmatprep.subr.mxu0 0.0
    %1520 = vmatpush1.msra.mxu0 0.0
    %1521 = vmatprep.subr.mxu0 0.0
    %1522 = vmatpush1.msra.mxu0 0.0
    %1523 = vmatprep.subr.mxu0 0.0
    %1524 = vmatpush1.msra.mxu0 0.0
    %1525 = vmatprep.subr.mxu0 0.0
    %1526 = vmatpush1.msra.mxu0 0.0
    %1527 = vmatprep.subr.mxu0 0.0
    %1528 = vmatpush1.msra.mxu0 0.0
    %1529 = vmatprep.subr.mxu0 0.0
    %1530 = vmatpush1.msra.mxu0 0.0
    %1531 = vmatprep.subr.mxu0 0.0
    %1532 = vmatpush1.msra.mxu0 0.0
    %1533 = vmatprep.subr.mxu0 0.0
    %1534 = vmatpush1.msra.mxu0 0.0
    %1535 = vmatprep.subr.mxu0 0.0
    %1536 = vmatpush1.msra.mxu0 0.0
    %1537 = vmatprep.subr.mxu0 0.0
    %1538 = vmatpush1.msra.mxu0 0.0
    %1539 = vmatprep.subr.mxu0 0.0
    %1540 = vmatpush1.msra.mxu0 0.0
    %1541 = vmatprep.subr.mxu0 0.0
    %1542 = vmatpush1.msra.mxu0 0.0
    %1543 = vmatprep.subr.mxu0 0.0
    %1544 = vmatpush1.msra.mxu0 0.0
    %1545 = vmatprep.subr.mxu0 0.0
    %1546 = vmatpush1.msra.mxu0 0.0
    %1547 = vmatprep.subr.mxu0 0.0
    %1548 = vmatpush1.msra.mxu0 0.0
    %1549 = vmatprep.subr.mxu0 0.0
    %1550 = vmatpush1.msra.mxu0 0.0
    %1551 = vmatprep.subr.mxu0 0.0
    %1552 = vmatpush1.msra.mxu0 0.0
    %1553 = vmatprep.subr.mxu0 0.0
    %1554 = vmatpush1.msra.mxu0 0.0
    %1555 = vmatprep.subr.mxu0 0.0
    %1556 = vmatpush1.msra.mxu0 0.0
    %1557 = vmatprep.subr.mxu0 0.0
    %1558 = vmatpush1.msra.mxu0 0.0
    %1559 = vmatprep.subr.mxu0 0.0
    %1560 = vmatpush1.msra.mxu0 0.0
    %1561 = vmatprep.subr.mxu0 0.0
    %1562 = vmatpush1.msra.mxu0 0.0
    %1563 = vmatprep.subr.mxu0 0.0
    %1564 = vmatpush1.msra.mxu0 0.0
    %1565 = vmatprep.subr.mxu0 0.0
    %1566 = vmatpush1.msra.mxu0 0.0
    %1567 = vmatprep.subr.mxu0 0.0
    %1568 = vmatpush1.msra.mxu0 0.0
    %1569 = vmatprep.subr.mxu0 0.0
    %1570 = vmatpush1.msra.mxu0 0.0
    %1571 = vmatprep.subr.mxu0 0.0
    %1572 = vmatpush1.msra.mxu0 0.0
    %1573 = vmatprep.subr.mxu0 0.0
    %1574 = vmatpush1.msra.mxu0 0.0
    %1575 = vmatprep.mubr.f32.mxu0 0.0
    %1576 = vmatmul.mubr.f32.gmra.mrb[0].mxu0 %v1509
    %v1577 = vpop.f32.mrb[0].mxu0
    %v1578 = vadd.f32 %v1507, %v1577
    %v1579 = vpop.f32.mrb[0].mxu0
    %1580 = vdwg.mxu0
    %1581 = vrot.lane.b32.xlu0 %v1051, 8
    %v1582 = vpop.permute.xlu0 %1581
    %1584 = vrot.lane.b32.xlu0 %v1225, 16
    %v1585 = vpop.permute.xlu0 %1584
    %1587 = vrot.lane.b32.xlu0 %v1398, 24
    %v1588 = vpop.permute.xlu0 %1587
    %v1590 = vsel %vm92, %v882, %v1582
    %v1591 = vsel %vm13, %v1590, %v1585
    %v1592 = vsel %vm1497, %v1591, %v1588
    %1593 = vst.msk [vmem:[#allocation2] sm:$0xff] %vm561, %v1578
    %1594 = vst.msk [vmem:[#allocation2 + $0x8] sm:$0xff] %vm561, %v551
    %1595 = vst.msk [vmem:[#allocation2 + $0x10] sm:$0xff] %vm561, %v1592
    %v1596 = vmul.f32 %v1482, 0.03125
    %v1597 = vxor.u32 %v1596, 2147483648
    %v1598 = vmul.f32 %v1597, 1.442695
    %v1599 = vpow.pop %v1598
    %v1600 = vadd.f32 %v1599, 1.0
    %v1601 = vrcp.pop %v1600
    %v1602 = vmul.f32 1.0, %v1601
    %v1603 = vld [vmem:[%s0 + $0x100] sm:$0x1]
    %v1604 = vlog2.pop %v1602
    %v1605 = vmul.f32 %v1604, 0.6931472
    %v1606 = vmax.f32 %v1605, -100.0
    %v1607 = vsub.f32 1.0, %v1602
    %v1608 = vlog2.pop %v1607
    %v1609 = vmul.f32 %v1608, 0.6931472
    %v1610 = vmax.f32 %v1609, -100.0
    %v1611 = vmul.f32 %v1603, %v1606
    %v1612 = vsub.f32 1.0, %v1603
    %v1613 = vmul.f32 %v1612, %v1610
    %v1614 = vadd.f32 %v1611, %v1613
    %v1615 = vsub.f32 0.0, %v1614
    %vm1616 = vcmask 57344
    %v1617 = vsel %vm1616, %v1615, 0.0
    %1618 = vadd.xlane.f32.xlu0 %v1617
    %v1619 = vpop.xlane.xlu0 %1618
    %v1620 = vrot.slane %v1619, 4
    %v1621 = vadd.f32 %v1619, %v1620
    %v1622 = vrot.slane %v1621, 2
    %v1623 = vadd.f32 %v1621, %v1622
    %v1624 = vrot.slane %v1623, 1
    %v1625 = vadd.f32 %v1623, %v1624
    %s1626 = vtos %v1625
    %v1627 = vstv %s1626
    %v1628 = vrcp.pop 8.0
    %v1629 = vmul.f32 %v1627, %v1628
    %v1630 = vld [vmem:[%s0 + $0xe0] sm:$0xff]
    %v1631 = vld [vmem:[%s0 + $0xe8] sm:$0xff]
    %v1632 = vld [vmem:[%s0 + $0xf0] sm:$0xff]
    %v1633 = vld [vmem:[%s0 + $0xf8] sm:$0xff]
    %1634 = vmatprep.subr.mxu0 0.0
    %1635 = vmatpush1.msra.mxu0 %v1630
    %1636 = vmatprep.subr.mxu0 0.0
    %1637 = vmatpush1.msra.mxu0 %v1631
    %1638 = vmatprep.subr.mxu0 0.0
    %1639 = vmatpush1.msra.mxu0 %v1632
    %1640 = vmatprep.subr.mxu0 0.0
    %1641 = vmatpush1.msra.mxu0 %v1633
    %1642 = vmatprep.subr.mxu0 0.0
    %1643 = vmatpush1.msra.mxu0 0.0
    %1644 = vmatprep.subr.mxu0 0.0
    %1645 = vmatpush1.msra.mxu0 0.0
    %1646 = vmatprep.subr.mxu0 0.0
    %1647 = vmatpush1.msra.mxu0 0.0
    %1648 = vmatprep.subr.mxu0 0.0
    %1649 = vmatpush1.msra.mxu0 0.0
    %1650 = vmatprep.subr.mxu0 0.0
    %1651 = vmatpush1.msra.mxu0 0.0
    %1652 = vmatprep.subr.mxu0 0.0
    %1653 = vmatpush1.msra.mxu0 0.0
    %1654 = vmatprep.subr.mxu0 0.0
    %1655 = vmatpush1.msra.mxu0 0.0
    %1656 = vmatprep.subr.mxu0 0.0
    %1657 = vmatpush1.msra.mxu0 0.0
    %1658 = vmatprep.subr.mxu0 0.0
    %1659 = vmatpush1.msra.mxu0 0.0
    %1660 = vmatprep.subr.mxu0 0.0
    %1661 = vmatpush1.msra.mxu0 0.0
    %1662 = vmatprep.subr.mxu0 0.0
    %1663 = vmatpush1.msra.mxu0 0.0
    %1664 = vmatprep.subr.mxu0 0.0
    %1665 = vmatpush1.msra.mxu0 0.0
    %1666 = vmatprep.subr.mxu0 0.0
    %1667 = vmatpush1.msra.mxu0 0.0
    %1668 = vmatprep.subr.mxu0 0.0
    %1669 = vmatpush1.msra.mxu0 0.0
    %1670 = vmatprep.subr.mxu0 0.0
    %1671 = vmatpush1.msra.mxu0 0.0
    %1672 = vmatprep.subr.mxu0 0.0
    %1673 = vmatpush1.msra.mxu0 0.0
    %1674 = vmatprep.subr.mxu0 0.0
    %1675 = vmatpush1.msra.mxu0 0.0
    %1676 = vmatprep.subr.mxu0 0.0
    %1677 = vmatpush1.msra.mxu0 0.0
    %1678 = vmatprep.subr.mxu0 0.0
    %1679 = vmatpush1.msra.mxu0 0.0
    %1680 = vmatprep.subr.mxu0 0.0
    %1681 = vmatpush1.msra.mxu0 0.0
    %1682 = vmatprep.subr.mxu0 0.0
    %1683 = vmatpush1.msra.mxu0 0.0
    %1684 = vmatprep.subr.mxu0 0.0
    %1685 = vmatpush1.msra.mxu0 0.0
    %1686 = vmatprep.subr.mxu0 0.0
    %1687 = vmatpush1.msra.mxu0 0.0
    %1688 = vmatprep.subr.mxu0 0.0
    %1689 = vmatpush1.msra.mxu0 0.0
    %1690 = vmatprep.subr.mxu0 0.0
    %1691 = vmatpush1.msra.mxu0 0.0
    %1692 = vmatprep.subr.mxu0 0.0
    %1693 = vmatpush1.msra.mxu0 0.0
    %1694 = vmatprep.subr.mxu0 0.0
    %1695 = vmatpush1.msra.mxu0 0.0
    %1696 = vmatprep.subr.mxu0 0.0
    %1697 = vmatpush1.msra.mxu0 0.0
    %1698 = vmatprep.mubr.f32.mxu0 0.0
    %1699 = vmatmul.mubr.f32.gmra.mrb[0].mxu0 %v563
    %v1700 = vpop.f32.mrb[0].mxu0
    %v1701 = vadd.f32 0.0, %v1700
    %v1702 = vpop.f32.mrb[0].mxu0
    %1703 = vdwg.mxu0
    %vm1704 = vcmask 522240
    %v1705 = vsel %vm1704, %v1701, -inf
    %1706 = vmax.xlane.f32.xlu0 %v1705
    %v1707 = vpop.xlane.xlu0 %1706
    %v1708 = vsub.f32 %v1701, %v1707
    %v1709 = vmul.f32 %v1708, 1.442695
    %v1710 = vpow.pop %v1709
    %v1711 = vsel %vm1704, %v1710, 0.0
    %1712 = vadd.xlane.f32.xlu0 %v1711
    %v1713 = vpop.xlane.xlu0 %1712
    %v1714 = vlog2.pop %v1713
    %v1715 = vmul.f32 %v1714, 0.6931472
    %v1716 = vadd.f32 %v1715, %v1707
    %v1717 = vld [vmem:[%s0 + $0x101] sm:$0x7f]
    %v1718 = vcvt.f32.s32.to.zero.pseudo %v1717
    %v1719 = vlaneseq
    %v1720 = vand.u32 %v1719, 127
    %1721 = vset.pattern.permute.xlu0 0
    %1722 = vperm.xlu0 %1721, %v1718
    %v1723 = vpop.permute.xlu0 %1722
    %vm1724 = vcmp.eq.s32.totalorder %v1720, %v1723
    %v1725 = vsel %vm1724, %v1701, 0.0
    %v1726 = vsel %vm1704, %v1725, 0.0
    %1727 = vadd.xlane.f32.xlu0 %v1726
    %v1728 = vpop.xlane.xlu0 %1727
    %v1729 = vsub.f32 %v1716, %v1728
    %vm1730 = vcmask 6144
    %v1731 = vsel %vm1730, %v1729, 0.0
    %1732 = vadd.xlane.f32.xlu0 %v1731
    %v1733 = vpop.xlane.xlu0 %1732
    %v1734 = vrot.slane %v1733, 4
    %v1735 = vadd.f32 %v1733, %v1734
    %v1736 = vrot.slane %v1735, 2
    %v1737 = vadd.f32 %v1735, %v1736
    %v1738 = vrot.slane %v1737, 1
    %v1739 = vadd.f32 %v1737, %v1738
    %s1740 = vtos %v1739
    %v1741 = vstv %s1740
    %v1742 = vrcp.pop 7.0
    %v1743 = vmul.f32 %v1741, %v1742
    %vm1744 = vcmp.eq.s32.totalorder %v1720, 0
    %v1745 = vsel %vm1744, %v1743, 0.0
    %vm1746 = vcmp.eq.s32.totalorder %v1720, 1
    %v1747 = vsel %vm1746, %v1629, 0.0
    %v1748 = vadd.f32 %v1745, %v1747
    %vm1749 = vcmask 253952
    %1750 = vst.msk [vmem:[#allocation2 + $0x18] sm:$0x1] %vm1749, %v1748
    // Predicated region
    $region6: #{tpu_custom_call.1} parent=1 // pred_check
      _
    $region7: #{tpu_custom_call.1} parent=1 // pred_check_branch
      %1752 = sbr.rel (0) target = $region9
    $region8: #{tpu_custom_call.1} parent=1 // pred_region
      %s1754 = ssub.s32 512, 512
      %1755 = vsyncadd [#allocation3], %s1754
      %s1756 = sshll.u32 [#allocation2], 4
      %s1757 = int_to_ptr.vmem [resolvable:$true] %s1756
      %1762 = dma.vmem_to_hbm [thread:$0]  %s1757, 512, %s1, [#allocation3], 128, 128, 8
    $region9: #{tpu_custom_call.1} parent=1 // pred_fallthru
      _
    // Predicated region
    $region10: #{tpu_custom_call.1} parent=1 // pred_check
      _
    $region11: #{tpu_custom_call.1} parent=1 // pred_check_branch
      %1764 = sbr.rel (0) target = $region13
    $region12: #{tpu_custom_call.1} parent=1 // pred_region
      %1765 = dma.done [#allocation3], 512
    $region13: #{tpu_custom_call.1} parent=1 // pred_fallthru
      _
    %1766 = vsyncpa [#allocation3], 1

</llo_original>
